<compile_context>
chip_gen: v7x
topology: tpu7x:2x2x1
jax: 0.10.0
libtpu: 0.0.40
codegen_flags: <defaults>
</compile_context>

<pallas_src>
import numpy as np
import jax
import jax.numpy as jnp
from jax.experimental import pallas as pl
from jax.experimental.pallas import tpu as pltpu

SHAPE = 8        # spatial size of the (square) input matrix
KERNEL = 3       # conv kernel size
BATCH = 8        # fills a sublane group; BN couples the batch so it stays whole
EPS = 1e-5
LEAKY_SLOPE = 0.01
LANE = 128
SUBLANE = 8


def _round_up(x, m):
    return (x + m - 1) // m * m


def _layer_dims(shape, kernel_size):
    """Replicates the layer bookkeeping in DCGAN_discriminator.__init__."""
    dims = []  # (cin, cout, k, hin) per conv+bn+leaky layer
    in_c, out_c, s = 1, 4, shape
    while s > kernel_size:
        dims.append((in_c, out_c, kernel_size, s))
        in_c, out_c = out_c, out_c * 2
        s = s - kernel_size + 1
    # final layer: nn.Conv2d(in_c, 1, s, bias=False)
    return dims, in_c, s


# ----------------------------------------------------------------------------
# Host-side parameter lowering / packing
# ----------------------------------------------------------------------------

def _lowered_conv(w_hwio, hin, k, cin, cout, rows_pad, cols_pad):
    """Dense VALID/stride-1 conv as a matrix: x_flat(N, rows_pad) @ W -> y_flat.

    Row order is (h, w, c) with c fastest; column order of the result is
    (oh, ow, co) with co fastest.  rows_pad / cols_pad >= real sizes; the
    padding region is left at exactly zero.
    """
    hout = hin - k + 1
    W = np.zeros((rows_pad, cols_pad), np.float32)
    w = np.asarray(w_hwio, np.float32)
    for oh in range(hout):
        for ow in range(hout):
            col0 = (oh * hout + ow) * cout
            for kh in range(k):
                for kw in range(k):
                    ih, iw = oh + kh, ow + kw
                    for ci in range(cin):
                        row = (ih * hin + iw) * cin + ci
                        W[row, col0:col0 + cout] = w[kh, kw, ci, :]
    return W


def _channel_maps(hout, cout, w_pad, c_pad):
    """P pools (h,w,c)-flattened lanes to per-channel sums; B = P^T broadcasts back."""
    P = np.zeros((w_pad, c_pad), np.float32)
    for pos in range(hout * hout):
        for c in range(cout):
            P[pos * cout + c, c] = 1.0
    return P, np.ascontiguousarray(P.T)


def _pack_params(conv_ws, gammas, betas, w_out, layer_dims, final_cin, final_k):
    """Pack every per-layer matrix into ONE 2-D array; pieces lane/sublane aligned."""
    pieces = []

    def add(arr):
        arr = np.asarray(arr, np.float32)
        if arr.ndim == 1:
            arr = arr[None, :]
        pieces.append(arr)
        return len(pieces) - 1

    raw_meta = []
    # input width of the very first matmul (= shape*shape*1), already a mult of 8
    in_w = layer_dims[0][3] * layer_dims[0][3] * layer_dims[0][0]
    for li, (cin, cout, k, hin) in enumerate(layer_dims):
        hout = hin - k + 1
        out_w_pad = _round_up(hout * hout * cout, LANE)   # lane-dense activation
        c_pad = _round_up(cout, SUBLANE)                  # sublane-dense channel dim
        W = _lowered_conv(conv_ws[li], hin, k, cin, cout, in_w, out_w_pad)
        P, B = _channel_maps(hout, cout, out_w_pad, c_pad)
        g = np.zeros((1, c_pad), np.float32)
        g[0, :cout] = np.asarray(gammas[li], np.float32)
        bt = np.zeros((1, c_pad), np.float32)
        bt[0, :cout] = np.asarray(betas[li], np.float32)
        raw_meta.append(dict(w=add(W), p=add(P), b=add(B), g=add(g), bt=add(bt),
                             hout=hout, cout=cout))
        in_w = out_w_pad

    w_out_low = _lowered_conv(w_out, final_k, final_k, final_cin, 1, in_w, 1)
    out_idx = add(w_out_low)

    max_cols = max(p.shape[1] for p in pieces)
    pad_cols = _round_up(max_cols, LANE)       # lane-aligned packed width
    offs, row = [], 0
    for p in pieces:
        offs.append(row)
        row += _round_up(p.shape[0], SUBLANE)  # sublane-aligned piece starts
    packed = np.zeros((_round_up(row, SUBLANE), pad_cols), np.float32)
    for p, off in zip(pieces, offs):
        packed[off:off + p.shape[0], :p.shape[1]] = p

    def loc(i):
        return (offs[i], pieces[i].shape[0], pieces[i].shape[1])

    meta = [dict(w=loc(m['w']), p=loc(m['p']), b=loc(m['b']),
                 g=loc(m['g']), bt=loc(m['bt']),
                 hout=m['hout'], cout=m['cout']) for m in raw_meta]
    return jnp.asarray(packed), meta, loc(out_idx)


# ----------------------------------------------------------------------------
# Pallas kernel
# ----------------------------------------------------------------------------

def _build_kernel(meta, out_loc, batch):
    """Builds the Pallas kernel body (all shapes/offsets are static Python ints)."""

    def kernel(x_ref, pk_ref, o_ref):
        def piece(loc):
            off, rows, cols = loc
            return pk_ref[off:off + rows, 0:cols]   # static, aligned slice

        x = x_ref[...]                              # (N, shape*shape) f32

        for m in meta:
            W = piece(m['w'])       # (in_w_pad, out_w_pad) lowered conv, lane-dense
            P = piece(m['p'])       # (out_w_pad, c_pad)  per-channel pooling
            B = piece(m['b'])       # (c_pad, out_w_pad)  per-channel broadcast
            gamma = piece(m['g'])   # (1, c_pad)
            beta = piece(m['bt'])   # (1, c_pad)

            # Conv2d(valid, stride 1, no bias) == ONE MXU matmul.
            y = jnp.dot(x, W, preferred_element_type=jnp.float32)   # (N, HWC_pad)

            # Fused one-pass BatchNorm2d (train mode, biased variance).
            inv_cnt = 1.0 / float(batch * m['hout'] * m['hout'])
            colsum = jnp.sum(y, axis=0, keepdims=True)               # (1, HWC_pad)
            colsq = jnp.sum(y * y, axis=0, keepdims=True)            # (1, HWC_pad)
            mean = jnp.dot(colsum, P, preferred_element_type=jnp.float32) * inv_cnt
            ex2 = jnp.dot(colsq, P, preferred_element_type=jnp.float32) * inv_cnt
            var = ex2 - mean * mean                                  # (1, c_pad)
            scale = gamma * jax.lax.rsqrt(var + EPS)                 # (1, c_pad)
            shift = beta - mean * scale                              # (1, c_pad)
            scale_f = jnp.dot(scale, B, preferred_element_type=jnp.float32)
            shift_f = jnp.dot(shift, B, preferred_element_type=jnp.float32)
            yb = y * scale_f + shift_f

            # F.leaky_relu, default negative_slope = 0.01 (slope < 1 => max is exact).
            x = jnp.maximum(yb, LEAKY_SLOPE * yb)

        # Final conv (kernel == remaining spatial, 1 output channel) + sigmoid.
        w_out = piece(out_loc)                                        # (in_w_pad, 1)
        logit = jnp.dot(x, w_out, preferred_element_type=jnp.float32)  # (N, 1)
        o_ref[...] = 1.0 / (1.0 + jnp.exp(-logit))

    return kernel


def dcgan_discriminator(x, conv_ws, gammas, betas, w_out, *,
                        shape=SHAPE, kernel_size=KERNEL):
    """x: (B, shape, shape) float32.  Returns (B, 1) like the PyTorch module."""
    layer_dims, final_cin, final_k = _layer_dims(shape, kernel_size)
    batch = x.shape[0]
    packed, meta, out_loc = _pack_params(conv_ws, gammas, betas, w_out,
                                         layer_dims, final_cin, final_k)
    x_flat = x.reshape(batch, shape * shape).astype(jnp.float32)

    kern = _build_kernel(meta, out_loc, batch)
    out = pl.pallas_call(
        kern,
        out_shape=jax.ShapeDtypeStruct((batch, 1), jnp.float32),
        in_specs=[pl.BlockSpec(memory_space=pltpu.MemorySpace.VMEM),
                  pl.BlockSpec(memory_space=pltpu.MemorySpace.VMEM)],
        out_specs=pl.BlockSpec(memory_space=pltpu.MemorySpace.VMEM),
    )(x_flat, packed)
    return out.reshape(-1, 1)


# ----------------------------------------------------------------------------
# Pure-JAX reference (mirrors the PyTorch forward in train() mode)
# ----------------------------------------------------------------------------

def reference_forward(x, conv_ws, gammas, betas, w_out, *,
                      shape=SHAPE, kernel_size=KERNEL):
    layer_dims, final_cin, final_k = _layer_dims(shape, kernel_size)
    batch = x.shape[0]
    h = x.reshape(batch, shape, shape, 1).astype(jnp.float32)
    for li, (cin, cout, k, hin) in enumerate(layer_dims):
        h = jax.lax.conv_general_dilated(
            h, conv_ws[li], (1, 1), "VALID",
            dimension_numbers=("NHWC", "HWIO", "NHWC"),
            precision=jax.lax.Precision.HIGHEST)
        mean = jnp.mean(h, axis=(0, 1, 2), keepdims=True)
        var = jnp.mean((h - mean) ** 2, axis=(0, 1, 2), keepdims=True)
        g = gammas[li].reshape(1, 1, 1, cout)
        b = betas[li].reshape(1, 1, 1, cout)
        h = (h - mean) * jax.lax.rsqrt(var + EPS) * g + b
        h = jnp.where(h > 0, h, LEAKY_SLOPE * h)
    h = jax.lax.conv_general_dilated(
        h, w_out, (1, 1), "VALID",
        dimension_numbers=("NHWC", "HWIO", "NHWC"),
        precision=jax.lax.Precision.HIGHEST)
    return (1.0 / (1.0 + jnp.exp(-h))).reshape(-1, 1)


if __name__ == "__main__":
    layer_dims, final_cin, final_k = _layer_dims(SHAPE, KERNEL)

    # Deterministic synthetic parameters (shapes follow the module's __init__),
    # conv weights stored directly in HWIO layout.
    key = jax.random.PRNGKey(0)
    conv_ws, gammas, betas = [], [], []
    for (cin, cout, k, hin) in layer_dims:
        key, k1, k2, k3 = jax.random.split(key, 4)
        bound = (cin * k * k) ** -0.5
        conv_ws.append(jax.random.uniform(k1, (k, k, cin, cout), jnp.float32,
                                          -bound, bound))
        gammas.append(1.0 + 0.1 * jax.random.normal(k2, (cout,), jnp.float32))
        betas.append(0.1 * jax.random.normal(k3, (cout,), jnp.float32))
    key, kf, kx = jax.random.split(key, 3)
    bound = (final_cin * final_k * final_k) ** -0.5
    w_out = jax.random.uniform(kf, (final_k, final_k, final_cin, 1), jnp.float32,
                               -bound, bound)
    x = jax.random.normal(kx, (BATCH, SHAPE, SHAPE), jnp.float32)

    out = jax.block_until_ready(
        dcgan_discriminator(x, conv_ws, gammas, betas, w_out))
    ref = jax.block_until_ready(
        reference_forward(x, conv_ws, gammas, betas, w_out))

    assert out.shape == (BATCH, 1)
    assert bool(jnp.all(jnp.isfinite(out)))
    # Slightly relaxed vs. ref to be robust to MXU f32-emulation summation order.
    assert bool(jnp.allclose(out, ref, atol=1e-4, rtol=1e-3)), (out, ref)
    print("KERNEL_OK")
</pallas_src>

<mosaic_0001>
module attributes {stable_mosaic.version = 11 : i64} {
  func.func @kernel(%arg0: memref<8x64xf32, #tpu.memory_space<vmem>>, %arg1: memref<1168x256xf32, #tpu.memory_space<vmem>>, %arg2: memref<8x1xf32, #tpu.memory_space<vmem>>) attributes {dimension_semantics = [], scalar_prefetch = 0 : i64, scratch_operands = 0 : i64, tpu.core_type = #tpu.core_type<tc>} {
    %c0 = arith.constant 0 : index
    %c0_0 = arith.constant 0 : index
    %0 = vector.load %arg0[%c0, %c0_0] : memref<8x64xf32, #tpu.memory_space<vmem>>, vector<8x64xf32>
    %c0_1 = arith.constant 0 : index
    %c0_2 = arith.constant 0 : index
    %1 = vector.load %arg1[%c0_1, %c0_2] : memref<1168x256xf32, #tpu.memory_space<vmem>>, vector<64x256xf32>
    %c64 = arith.constant 64 : index
    %c0_3 = arith.constant 0 : index
    %2 = vector.load %arg1[%c64, %c0_3] : memref<1168x256xf32, #tpu.memory_space<vmem>>, vector<256x8xf32>
    %c320 = arith.constant 320 : index
    %c0_4 = arith.constant 0 : index
    %3 = vector.load %arg1[%c320, %c0_4] : memref<1168x256xf32, #tpu.memory_space<vmem>>, vector<8x256xf32>
    %c328 = arith.constant 328 : index
    %c0_5 = arith.constant 0 : index
    %4 = vector.load %arg1[%c328, %c0_5] : memref<1168x256xf32, #tpu.memory_space<vmem>>, vector<1x8xf32>
    %c336 = arith.constant 336 : index
    %c0_6 = arith.constant 0 : index
    %5 = vector.load %arg1[%c336, %c0_6] : memref<1168x256xf32, #tpu.memory_space<vmem>>, vector<1x8xf32>
    %cst = arith.constant dense<0.000000e+00> : vector<8x256xf32>
    %6 = tpu.matmul %0, %1, %cst {dimension_numbers = #tpu.dot_dimension_numbers<[1], [0], [0], [1], [0, 0, 1, 1], [], []>} : vector<8x64xf32>, vector<64x256xf32>, vector<8x256xf32> -> vector<8x256xf32>
    %cst_7 = arith.constant dense<0.000000e+00> : vector<256xf32>
    %7 = vector.multi_reduction <add>, %6, %cst_7 [0] : vector<8x256xf32> to vector<256xf32>
    %8 = vector.shape_cast %7 : vector<256xf32> to vector<1x256xf32>
    %9 = arith.mulf %6, %6 : vector<8x256xf32>
    %cst_8 = arith.constant dense<0.000000e+00> : vector<256xf32>
    %10 = vector.multi_reduction <add>, %9, %cst_8 [0] : vector<8x256xf32> to vector<256xf32>
    %11 = vector.shape_cast %10 : vector<256xf32> to vector<1x256xf32>
    %cst_9 = arith.constant dense<0.000000e+00> : vector<1x8xf32>
    %12 = tpu.matmul %8, %2, %cst_9 {dimension_numbers = #tpu.dot_dimension_numbers<[1], [0], [0], [1], [0, 0, 1, 1], [], []>} : vector<1x256xf32>, vector<256x8xf32>, vector<1x8xf32> -> vector<1x8xf32>
    %cst_10 = arith.constant 0.00347222225 : f32
    %13 = vector.broadcast %cst_10 : f32 to vector<1x8xf32>
    %14 = arith.mulf %12, %13 : vector<1x8xf32>
    %cst_11 = arith.constant dense<0.000000e+00> : vector<1x8xf32>
    %15 = tpu.matmul %11, %2, %cst_11 {dimension_numbers = #tpu.dot_dimension_numbers<[1], [0], [0], [1], [0, 0, 1, 1], [], []>} : vector<1x256xf32>, vector<256x8xf32>, vector<1x8xf32> -> vector<1x8xf32>
    %cst_12 = arith.constant 0.00347222225 : f32
    %16 = vector.broadcast %cst_12 : f32 to vector<1x8xf32>
    %17 = arith.mulf %15, %16 : vector<1x8xf32>
    %18 = arith.mulf %14, %14 : vector<1x8xf32>
    %19 = arith.subf %17, %18 : vector<1x8xf32>
    %cst_13 = arith.constant 9.99999974E-6 : f32
    %20 = vector.broadcast %cst_13 : f32 to vector<1x8xf32>
    %21 = arith.addf %19, %20 : vector<1x8xf32>
    %22 = math.rsqrt %21 : vector<1x8xf32>
    %23 = arith.mulf %4, %22 : vector<1x8xf32>
    %24 = arith.mulf %14, %23 : vector<1x8xf32>
    %25 = arith.subf %5, %24 : vector<1x8xf32>
    %cst_14 = arith.constant dense<0.000000e+00> : vector<1x256xf32>
    %26 = tpu.matmul %23, %3, %cst_14 {dimension_numbers = #tpu.dot_dimension_numbers<[1], [0], [0], [1], [0, 0, 1, 1], [], []>} : vector<1x8xf32>, vector<8x256xf32>, vector<1x256xf32> -> vector<1x256xf32>
    %cst_15 = arith.constant dense<0.000000e+00> : vector<1x256xf32>
    %27 = tpu.matmul %25, %3, %cst_15 {dimension_numbers = #tpu.dot_dimension_numbers<[1], [0], [0], [1], [0, 0, 1, 1], [], []>} : vector<1x8xf32>, vector<8x256xf32>, vector<1x256xf32> -> vector<1x256xf32>
    %28 = vector.broadcast %26 : vector<1x256xf32> to vector<8x256xf32>
    %29 = arith.mulf %6, %28 : vector<8x256xf32>
    %30 = vector.broadcast %27 : vector<1x256xf32> to vector<8x256xf32>
    %31 = arith.addf %29, %30 : vector<8x256xf32>
    %cst_16 = arith.constant 0.00999999977 : f32
    %32 = vector.broadcast %cst_16 : f32 to vector<8x256xf32>
    %33 = arith.mulf %32, %31 : vector<8x256xf32>
    %34 = arith.maximumf %31, %33 : vector<8x256xf32>
    %c344 = arith.constant 344 : index
    %c0_17 = arith.constant 0 : index
    %35 = vector.load %arg1[%c344, %c0_17] : memref<1168x256xf32, #tpu.memory_space<vmem>>, vector<256x128xf32>
    %c600 = arith.constant 600 : index
    %c0_18 = arith.constant 0 : index
    %36 = vector.load %arg1[%c600, %c0_18] : memref<1168x256xf32, #tpu.memory_space<vmem>>, vector<128x8xf32>
    %c728 = arith.constant 728 : index
    %c0_19 = arith.constant 0 : index
    %37 = vector.load %arg1[%c728, %c0_19] : memref<1168x256xf32, #tpu.memory_space<vmem>>, vector<8x128xf32>
    %c736 = arith.constant 736 : index
    %c0_20 = arith.constant 0 : index
    %38 = vector.load %arg1[%c736, %c0_20] : memref<1168x256xf32, #tpu.memory_space<vmem>>, vector<1x8xf32>
    %c744 = arith.constant 744 : index
    %c0_21 = arith.constant 0 : index
    %39 = vector.load %arg1[%c744, %c0_21] : memref<1168x256xf32, #tpu.memory_space<vmem>>, vector<1x8xf32>
    %cst_22 = arith.constant dense<0.000000e+00> : vector<8x128xf32>
    %40 = tpu.matmul %34, %35, %cst_22 {dimension_numbers = #tpu.dot_dimension_numbers<[1], [0], [0], [1], [0, 0, 1, 1], [], []>} : vector<8x256xf32>, vector<256x128xf32>, vector<8x128xf32> -> vector<8x128xf32>
    %cst_23 = arith.constant dense<0.000000e+00> : vector<128xf32>
    %41 = vector.multi_reduction <add>, %40, %cst_23 [0] : vector<8x128xf32> to vector<128xf32>
    %42 = vector.shape_cast %41 : vector<128xf32> to vector<1x128xf32>
    %43 = arith.mulf %40, %40 : vector<8x128xf32>
    %cst_24 = arith.constant dense<0.000000e+00> : vector<128xf32>
    %44 = vector.multi_reduction <add>, %43, %cst_24 [0] : vector<8x128xf32> to vector<128xf32>
    %45 = vector.shape_cast %44 : vector<128xf32> to vector<1x128xf32>
    %cst_25 = arith.constant dense<0.000000e+00> : vector<1x8xf32>
    %46 = tpu.matmul %42, %36, %cst_25 {dimension_numbers = #tpu.dot_dimension_numbers<[1], [0], [0], [1], [0, 0, 1, 1], [], []>} : vector<1x128xf32>, vector<128x8xf32>, vector<1x8xf32> -> vector<1x8xf32>
    %cst_26 = arith.constant 7.812500e-03 : f32
    %47 = vector.broadcast %cst_26 : f32 to vector<1x8xf32>
    %48 = arith.mulf %46, %47 : vector<1x8xf32>
    %cst_27 = arith.constant dense<0.000000e+00> : vector<1x8xf32>
    %49 = tpu.matmul %45, %36, %cst_27 {dimension_numbers = #tpu.dot_dimension_numbers<[1], [0], [0], [1], [0, 0, 1, 1], [], []>} : vector<1x128xf32>, vector<128x8xf32>, vector<1x8xf32> -> vector<1x8xf32>
    %cst_28 = arith.constant 7.812500e-03 : f32
    %50 = vector.broadcast %cst_28 : f32 to vector<1x8xf32>
    %51 = arith.mulf %49, %50 : vector<1x8xf32>
    %52 = arith.mulf %48, %48 : vector<1x8xf32>
    %53 = arith.subf %51, %52 : vector<1x8xf32>
    %cst_29 = arith.constant 9.99999974E-6 : f32
    %54 = vector.broadcast %cst_29 : f32 to vector<1x8xf32>
    %55 = arith.addf %53, %54 : vector<1x8xf32>
    %56 = math.rsqrt %55 : vector<1x8xf32>
    %57 = arith.mulf %38, %56 : vector<1x8xf32>
    %58 = arith.mulf %48, %57 : vector<1x8xf32>
    %59 = arith.subf %39, %58 : vector<1x8xf32>
    %cst_30 = arith.constant dense<0.000000e+00> : vector<1x128xf32>
    %60 = tpu.matmul %57, %37, %cst_30 {dimension_numbers = #tpu.dot_dimension_numbers<[1], [0], [0], [1], [0, 0, 1, 1], [], []>} : vector<1x8xf32>, vector<8x128xf32>, vector<1x128xf32> -> vector<1x128xf32>
    %cst_31 = arith.constant dense<0.000000e+00> : vector<1x128xf32>
    %61 = tpu.matmul %59, %37, %cst_31 {dimension_numbers = #tpu.dot_dimension_numbers<[1], [0], [0], [1], [0, 0, 1, 1], [], []>} : vector<1x8xf32>, vector<8x128xf32>, vector<1x128xf32> -> vector<1x128xf32>
    %62 = vector.broadcast %60 : vector<1x128xf32> to vector<8x128xf32>
    %63 = arith.mulf %40, %62 : vector<8x128xf32>
    %64 = vector.broadcast %61 : vector<1x128xf32> to vector<8x128xf32>
    %65 = arith.addf %63, %64 : vector<8x128xf32>
    %cst_32 = arith.constant 0.00999999977 : f32
    %66 = vector.broadcast %cst_32 : f32 to vector<8x128xf32>
    %67 = arith.mulf %66, %65 : vector<8x128xf32>
    %68 = arith.maximumf %65, %67 : vector<8x128xf32>
    %c752 = arith.constant 752 : index
    %c0_33 = arith.constant 0 : index
    %69 = vector.load %arg1[%c752, %c0_33] : memref<1168x256xf32, #tpu.memory_space<vmem>>, vector<128x128xf32>
    %c880 = arith.constant 880 : index
    %c0_34 = arith.constant 0 : index
    %70 = vector.load %arg1[%c880, %c0_34] : memref<1168x256xf32, #tpu.memory_space<vmem>>, vector<128x16xf32>
    %c1008 = arith.constant 1008 : index
    %c0_35 = arith.constant 0 : index
    %71 = vector.load %arg1[%c1008, %c0_35] : memref<1168x256xf32, #tpu.memory_space<vmem>>, vector<16x128xf32>
    %c1024 = arith.constant 1024 : index
    %c0_36 = arith.constant 0 : index
    %72 = vector.load %arg1[%c1024, %c0_36] : memref<1168x256xf32, #tpu.memory_space<vmem>>, vector<1x16xf32>
    %c1032 = arith.constant 1032 : index
    %c0_37 = arith.constant 0 : index
    %73 = vector.load %arg1[%c1032, %c0_37] : memref<1168x256xf32, #tpu.memory_space<vmem>>, vector<1x16xf32>
    %cst_38 = arith.constant dense<0.000000e+00> : vector<8x128xf32>
    %74 = tpu.matmul %68, %69, %cst_38 {dimension_numbers = #tpu.dot_dimension_numbers<[1], [0], [0], [1], [0, 0, 1, 1], [], []>} : vector<8x128xf32>, vector<128x128xf32>, vector<8x128xf32> -> vector<8x128xf32>
    %cst_39 = arith.constant dense<0.000000e+00> : vector<128xf32>
    %75 = vector.multi_reduction <add>, %74, %cst_39 [0] : vector<8x128xf32> to vector<128xf32>
    %76 = vector.shape_cast %75 : vector<128xf32> to vector<1x128xf32>
    %77 = arith.mulf %74, %74 : vector<8x128xf32>
    %cst_40 = arith.constant dense<0.000000e+00> : vector<128xf32>
    %78 = vector.multi_reduction <add>, %77, %cst_40 [0] : vector<8x128xf32> to vector<128xf32>
    %79 = vector.shape_cast %78 : vector<128xf32> to vector<1x128xf32>
    %cst_41 = arith.constant dense<0.000000e+00> : vector<1x16xf32>
    %80 = tpu.matmul %76, %70, %cst_41 {dimension_numbers = #tpu.dot_dimension_numbers<[1], [0], [0], [1], [0, 0, 1, 1], [], []>} : vector<1x128xf32>, vector<128x16xf32>, vector<1x16xf32> -> vector<1x16xf32>
    %cst_42 = arith.constant 3.125000e-02 : f32
    %81 = vector.broadcast %cst_42 : f32 to vector<1x16xf32>
    %82 = arith.mulf %80, %81 : vector<1x16xf32>
    %cst_43 = arith.constant dense<0.000000e+00> : vector<1x16xf32>
    %83 = tpu.matmul %79, %70, %cst_43 {dimension_numbers = #tpu.dot_dimension_numbers<[1], [0], [0], [1], [0, 0, 1, 1], [], []>} : vector<1x128xf32>, vector<128x16xf32>, vector<1x16xf32> -> vector<1x16xf32>
    %cst_44 = arith.constant 3.125000e-02 : f32
    %84 = vector.broadcast %cst_44 : f32 to vector<1x16xf32>
    %85 = arith.mulf %83, %84 : vector<1x16xf32>
    %86 = arith.mulf %82, %82 : vector<1x16xf32>
    %87 = arith.subf %85, %86 : vector<1x16xf32>
    %cst_45 = arith.constant 9.99999974E-6 : f32
    %88 = vector.broadcast %cst_45 : f32 to vector<1x16xf32>
    %89 = arith.addf %87, %88 : vector<1x16xf32>
    %90 = math.rsqrt %89 : vector<1x16xf32>
    %91 = arith.mulf %72, %90 : vector<1x16xf32>
    %92 = arith.mulf %82, %91 : vector<1x16xf32>
    %93 = arith.subf %73, %92 : vector<1x16xf32>
    %cst_46 = arith.constant dense<0.000000e+00> : vector<1x128xf32>
    %94 = tpu.matmul %91, %71, %cst_46 {dimension_numbers = #tpu.dot_dimension_numbers<[1], [0], [0], [1], [0, 0, 1, 1], [], []>} : vector<1x16xf32>, vector<16x128xf32>, vector<1x128xf32> -> vector<1x128xf32>
    %cst_47 = arith.constant dense<0.000000e+00> : vector<1x128xf32>
    %95 = tpu.matmul %93, %71, %cst_47 {dimension_numbers = #tpu.dot_dimension_numbers<[1], [0], [0], [1], [0, 0, 1, 1], [], []>} : vector<1x16xf32>, vector<16x128xf32>, vector<1x128xf32> -> vector<1x128xf32>
    %96 = vector.broadcast %94 : vector<1x128xf32> to vector<8x128xf32>
    %97 = arith.mulf %74, %96 : vector<8x128xf32>
    %98 = vector.broadcast %95 : vector<1x128xf32> to vector<8x128xf32>
    %99 = arith.addf %97, %98 : vector<8x128xf32>
    %cst_48 = arith.constant 0.00999999977 : f32
    %100 = vector.broadcast %cst_48 : f32 to vector<8x128xf32>
    %101 = arith.mulf %100, %99 : vector<8x128xf32>
    %102 = arith.maximumf %99, %101 : vector<8x128xf32>
    %c1040 = arith.constant 1040 : index
    %c0_49 = arith.constant 0 : index
    %103 = vector.load %arg1[%c1040, %c0_49] : memref<1168x256xf32, #tpu.memory_space<vmem>>, vector<128x1xf32>
    %cst_50 = arith.constant dense<0.000000e+00> : vector<8x1xf32>
    %104 = tpu.matmul %102, %103, %cst_50 {dimension_numbers = #tpu.dot_dimension_numbers<[1], [0], [0], [1], [0, 0, 1, 1], [], []>} : vector<8x128xf32>, vector<128x1xf32>, vector<8x1xf32> -> vector<8x1xf32>
    %cst_51 = arith.constant 0.000000e+00 : f32
    %105 = vector.broadcast %cst_51 : f32 to vector<8x1xf32>
    %106 = arith.subf %105, %104 : vector<8x1xf32>
    %107 = math.exp %106 : vector<8x1xf32>
    %cst_52 = arith.constant 1.000000e+00 : f32
    %108 = vector.broadcast %cst_52 : f32 to vector<8x1xf32>
    %109 = arith.addf %108, %107 : vector<8x1xf32>
    %cst_53 = arith.constant 1.000000e+00 : f32
    %110 = vector.broadcast %cst_53 : f32 to vector<8x1xf32>
    %111 = arith.divf %110, %109 : vector<8x1xf32>
    %c0_54 = arith.constant 0 : index
    %c0_55 = arith.constant 0 : index
    %112 = vector.load %arg2[%c0_54, %c0_55] : memref<8x1xf32, #tpu.memory_space<vmem>>, vector<8x1xf32>
    tpu.vector_store %arg2[%c0_54, %c0_55], %111 {strides = array<i32>} : memref<8x1xf32, #tpu.memory_space<vmem>>, vector<8x1xf32>,
    return
  }
}

</mosaic_0001>

<llo_original>
// kernel: tpu_custom_call.1
$region0: #{tpu_custom_call.1}
  #allocation0 [shape = 'u32[]', space=smem, size = 0x4, offset = 0x4, fixed_abs, tag = 'smem constant byte address 0x4 - core index']
  #allocation1 [shape = 'u32[144,128]{1,0:T(1,128)}', space=vmem, size = 0x12000, scoped, tag = 'internal scratch']
  %s0 = inlined_call_operand.hbm [shape: f32[8,64], index: 0, kind: input, shape index: {}]
  %s1 = inlined_call_operand.hbm [shape: f32[1168,256], index: 1, kind: input, shape index: {}]
  %s2 = inlined_call_operand.vmem [shape: f32[8,1], index: 2, kind: output, shape index: {}]
  %s3 = sld [smem:[#allocation0]]
  $region26: #{tpu_custom_call.1} parent=0
    _
  %s5 = ssub.s32 1, %s3
  %s6 = scalar_select 0, %s5, %s3
  $region1: #{tpu_custom_call.1} parent=0
    #allocation2 [shape = 'u8[4096]{0}', space=vmem, size = 0x1000, scoped, tag = 'input window, operand 0, single buffered']
    #allocation3 [shape = 's32[1]{0}', space=sflag, size = 0x4, scoped, tag = 'scoped memory for tpu_custom_call.1']
    #allocation4 [shape = 'u8[1196032]{0}', space=vmem, size = 0x124000, scoped, tag = 'input window, operand 1, single buffered']
    #allocation5 [shape = 's32[1]{0}', space=sflag, size = 0x4, scoped, tag = 'scoped memory for tpu_custom_call.1']
    %7 = vsyncpa [#allocation3], 0
    %8 = vsyncpa [#allocation5], 0
    // Predicated region
    $region2: #{tpu_custom_call.1} parent=1 // pred_check
      _
    $region3: #{tpu_custom_call.1} parent=1 // pred_check_branch
      %10 = sbr.rel (0) target = $region5
    $region4: #{tpu_custom_call.1} parent=1 // pred_region
      %s12 = ssub.s32 128, 128
      %13 = vsyncadd [#allocation3], %s12
      %s15 = sshll.u32 [#allocation2], 4
      %s16 = int_to_ptr.vmem [resolvable:$true] %s15
      %18 = dma.hbm_to_vmem [thread:$0]  %s0, 128, %s16, [#allocation3]
    $region5: #{tpu_custom_call.1} parent=1 // pred_fallthru
      _
    // Predicated region
    $region6: #{tpu_custom_call.1} parent=1 // pred_check
      _
    $region7: #{tpu_custom_call.1} parent=1 // pred_check_branch
      %20 = sbr.rel (0) target = $region9
    $region8: #{tpu_custom_call.1} parent=1 // pred_region
      %s22 = ssub.s32 37376, 37376
      %23 = vsyncadd [#allocation5], %s22
      %s24 = sshll.u32 [#allocation4], 4
      %s25 = int_to_ptr.vmem [resolvable:$true] %s24
      %30 = dma.hbm_to_vmem [thread:$0]  %s1, 37376, %s25, [#allocation5], 256, 256, 16
    $region9: #{tpu_custom_call.1} parent=1 // pred_fallthru
      _
    // Predicated region
    $region10: #{tpu_custom_call.1} parent=1 // pred_check
      _
    $region11: #{tpu_custom_call.1} parent=1 // pred_check_branch
      %32 = sbr.rel (0) target = $region13
    $region12: #{tpu_custom_call.1} parent=1 // pred_region
      %33 = dma.done [#allocation3], 128
    $region13: #{tpu_custom_call.1} parent=1 // pred_fallthru
      _
    // Predicated region
    $region14: #{tpu_custom_call.1} parent=1 // pred_check
      _
    $region15: #{tpu_custom_call.1} parent=1 // pred_check_branch
      %35 = sbr.rel (0) target = $region17
    $region16: #{tpu_custom_call.1} parent=1 // pred_region
      %36 = dma.done [#allocation5], 37376
    $region17: #{tpu_custom_call.1} parent=1 // pred_fallthru
      _
    %v37 = vld [vmem:[#allocation2] sm:$0xff]
    %v38 = vld [vmem:[#allocation4] sm:$0xff]
    %v39 = vld [vmem:[#allocation4 + $0x8] sm:$0xff]
    %v40 = vld [vmem:[#allocation4 + $0x10] sm:$0xff]
    %v41 = vld [vmem:[#allocation4 + $0x18] sm:$0xff]
    %v42 = vld [vmem:[#allocation4 + $0x20] sm:$0xff]
    %v43 = vld [vmem:[#allocation4 + $0x28] sm:$0xff]
    %v44 = vld [vmem:[#allocation4 + $0x30] sm:$0xff]
    %v45 = vld [vmem:[#allocation4 + $0x38] sm:$0xff]
    %v46 = vld [vmem:[#allocation4 + $0x40] sm:$0xff]
    %v47 = vld [vmem:[#allocation4 + $0x48] sm:$0xff]
    %v48 = vld [vmem:[#allocation4 + $0x50] sm:$0xff]
    %v49 = vld [vmem:[#allocation4 + $0x58] sm:$0xff]
    %v50 = vld [vmem:[#allocation4 + $0x60] sm:$0xff]
    %v51 = vld [vmem:[#allocation4 + $0x68] sm:$0xff]
    %v52 = vld [vmem:[#allocation4 + $0x70] sm:$0xff]
    %v53 = vld [vmem:[#allocation4 + $0x78] sm:$0xff]
    %v54 = vld [vmem:[#allocation4 + $0x80] sm:$0xff]
    %v55 = vld [vmem:[#allocation4 + $0x90] sm:$0xff]
    %v56 = vld [vmem:[#allocation4 + $0xa0] sm:$0xff]
    %v57 = vld [vmem:[#allocation4 + $0xb0] sm:$0xff]
    %v58 = vld [vmem:[#allocation4 + $0xc0] sm:$0xff]
    %v59 = vld [vmem:[#allocation4 + $0xd0] sm:$0xff]
    %v60 = vld [vmem:[#allocation4 + $0xe0] sm:$0xff]
    %v61 = vld [vmem:[#allocation4 + $0xf0] sm:$0xff]
    %v62 = vld [vmem:[#allocation4 + $0x100] sm:$0xff]
    %v63 = vld [vmem:[#allocation4 + $0x110] sm:$0xff]
    %v64 = vld [vmem:[#allocation4 + $0x120] sm:$0xff]
    %v65 = vld [vmem:[#allocation4 + $0x130] sm:$0xff]
    %v66 = vld [vmem:[#allocation4 + $0x140] sm:$0xff]
    %v67 = vld [vmem:[#allocation4 + $0x150] sm:$0xff]
    %v68 = vld [vmem:[#allocation4 + $0x160] sm:$0xff]
    %v69 = vld [vmem:[#allocation4 + $0x170] sm:$0xff]
    %v70 = vld [vmem:[#allocation4 + $0x180] sm:$0xff]
    %v71 = vld [vmem:[#allocation4 + $0x190] sm:$0xff]
    %v72 = vld [vmem:[#allocation4 + $0x1a0] sm:$0xff]
    %v73 = vld [vmem:[#allocation4 + $0x1b0] sm:$0xff]
    %v74 = vld [vmem:[#allocation4 + $0x1c0] sm:$0xff]
    %v75 = vld [vmem:[#allocation4 + $0x1d0] sm:$0xff]
    %v76 = vld [vmem:[#allocation4 + $0x1e0] sm:$0xff]
    %v77 = vld [vmem:[#allocation4 + $0x1f0] sm:$0xff]
    %v78 = vld [vmem:[#allocation4 + $0x200] sm:$0xff]
    %v79 = vld [vmem:[#allocation4 + $0x210] sm:$0xff]
    %v80 = vld [vmem:[#allocation4 + $0x220] sm:$0xff]
    %v81 = vld [vmem:[#allocation4 + $0x230] sm:$0xff]
    %v82 = vld [vmem:[#allocation4 + $0x240] sm:$0xff]
    %v83 = vld [vmem:[#allocation4 + $0x250] sm:$0xff]
    %v84 = vld [vmem:[#allocation4 + $0x260] sm:$0xff]
    %v85 = vld [vmem:[#allocation4 + $0x270] sm:$0xff]
    %v86 = vld [vmem:[#allocation4 + $0x280] sm:$0xff]
    %v87 = vld [vmem:[#allocation4 + $0x288] sm:$0xff]
    %v88 = vld [vmem:[#allocation4 + $0x290] ss:$0 sm:$0xff]
    %v89 = vld [vmem:[#allocation4 + $0x2a0] ss:$0 sm:$0xff]
    %vm90 = vcmask 523264
    %v92 = vsel %vm90, %v37, 0
    %94 = vmatprep.subr.mxu0 %v39
    %95 = vmatpush1.msra.mxu0 %v38
    %96 = vmatprep.subr.mxu0 %v41
    %97 = vmatpush1.msra.mxu0 %v40
    %98 = vmatprep.subr.mxu0 %v43
    %99 = vmatpush1.msra.mxu0 %v42
    %100 = vmatprep.subr.mxu0 %v45
    %101 = vmatpush1.msra.mxu0 %v44
    %102 = vmatprep.subr.mxu0 %v47
    %103 = vmatpush1.msra.mxu0 %v46
    %104 = vmatprep.subr.mxu0 %v49
    %105 = vmatpush1.msra.mxu0 %v48
    %106 = vmatprep.subr.mxu0 %v51
    %107 = vmatpush1.msra.mxu0 %v50
    %108 = vmatprep.subr.mxu0 %v53
    %109 = vmatpush1.msra.mxu0 %v52
    %110 = vmatprep.subr.mxu0 0.0
    %111 = vmatpush1.msra.mxu0 0.0
    %112 = vmatprep.subr.mxu0 0.0
    %113 = vmatpush1.msra.mxu0 0.0
    %114 = vmatprep.subr.mxu0 0.0
    %115 = vmatpush1.msra.mxu0 0.0
    %116 = vmatprep.subr.mxu0 0.0
    %117 = vmatpush1.msra.mxu0 0.0
    %118 = vmatprep.subr.mxu0 0.0
    %119 = vmatpush1.msra.mxu0 0.0
    %120 = vmatprep.subr.mxu0 0.0
    %121 = vmatpush1.msra.mxu0 0.0
    %122 = vmatprep.subr.mxu0 0.0
    %123 = vmatpush1.msra.mxu0 0.0
    %124 = vmatprep.subr.mxu0 0.0
    %125 = vmatpush1.msra.mxu0 0.0
    %126 = vmatprep.subr.mxu0 0.0
    %127 = vmatpush1.msra.mxu0 0.0
    %128 = vmatprep.subr.mxu0 0.0
    %129 = vmatpush1.msra.mxu0 0.0
    %130 = vmatprep.subr.mxu0 0.0
    %131 = vmatpush1.msra.mxu0 0.0
    %132 = vmatprep.subr.mxu0 0.0
    %133 = vmatpush1.msra.mxu0 0.0
    %134 = vmatprep.subr.mxu0 0.0
    %135 = vmatpush1.msra.mxu0 0.0
    %136 = vmatprep.subr.mxu0 0.0
    %137 = vmatpush1.msra.mxu0 0.0
    %138 = vmatprep.subr.mxu0 0.0
    %139 = vmatpush1.msra.mxu0 0.0
    %140 = vmatprep.subr.mxu0 0.0
    %141 = vmatpush1.msra.mxu0 0.0
    %142 = vmatprep.subr.mxu0 0.0
    %143 = vmatpush1.msra.mxu0 0.0
    %144 = vmatprep.subr.mxu0 0.0
    %145 = vmatpush1.msra.mxu0 0.0
    %146 = vmatprep.subr.mxu0 0.0
    %147 = vmatpush1.msra.mxu0 0.0
    %148 = vmatprep.subr.mxu0 0.0
    %149 = vmatpush1.msra.mxu0 0.0
    %150 = vmatprep.subr.mxu0 0.0
    %151 = vmatpush1.msra.mxu0 0.0
    %152 = vmatprep.subr.mxu0 0.0
    %153 = vmatpush1.msra.mxu0 0.0
    %154 = vmatprep.subr.mxu0 0.0
    %155 = vmatpush1.msra.mxu0 0.0
    %156 = vmatprep.subr.mxu0 0.0
    %157 = vmatpush1.msra.mxu0 0.0
    %158 = vmatprep.mubr.f32.mxu0 0.0
    %159 = vmatmul.mubr.f32.gmra.mrb[0].mxu0 %v92
    %v160 = vpop.f32.mrb[0].mxu0
    %v161 = vadd.f32 0.0, %v160
    %v162 = vpop.f32.mrb[0].mxu0
    %v163 = vadd.f32 0.0, %v162
    %164 = vdwg.mxu0
    %v165 = vrot.slane %v161, 4
    %v166 = vadd.f32 %v161, %v165
    %v167 = vrot.slane %v166, 2
    %v168 = vadd.f32 %v166, %v167
    %v169 = vrot.slane %v168, 1
    %v170 = vadd.f32 %v168, %v169
    %v171 = vrot.slane %v163, 4
    %v172 = vadd.f32 %v163, %v171
    %v173 = vrot.slane %v172, 2
    %v174 = vadd.f32 %v172, %v173
    %v175 = vrot.slane %v174, 1
    %v176 = vadd.f32 %v174, %v175
    %v177 = vmul.f32 %v161, %v161
    %v178 = vmul.f32 %v163, %v163
    %v179 = vrot.slane %v177, 4
    %v180 = vadd.f32 %v177, %v179
    %v181 = vrot.slane %v180, 2
    %v182 = vadd.f32 %v180, %v181
    %v183 = vrot.slane %v182, 1
    %v184 = vadd.f32 %v182, %v183
    %v185 = vrot.slane %v178, 4
    %v186 = vadd.f32 %v178, %v185
    %v187 = vrot.slane %v186, 2
    %v188 = vadd.f32 %v186, %v187
    %v189 = vrot.slane %v188, 1
    %v190 = vadd.f32 %v188, %v189
    %191 = vmatprep.subr.mxu0 0.0
    %192 = vmatpush1.msra.mxu0 %v54
    %193 = vmatprep.subr.mxu0 0.0
    %194 = vmatpush1.msra.mxu0 %v55
    %195 = vmatprep.subr.mxu0 0.0
    %196 = vmatpush1.msra.mxu0 %v56
    %197 = vmatprep.subr.mxu0 0.0
    %198 = vmatpush1.msra.mxu0 %v57
    %199 = vmatprep.subr.mxu0 0.0
    %200 = vmatpush1.msra.mxu0 %v58
    %201 = vmatprep.subr.mxu0 0.0
    %202 = vmatpush1.msra.mxu0 %v59
    %203 = vmatprep.subr.mxu0 0.0
    %204 = vmatpush1.msra.mxu0 %v60
    %205 = vmatprep.subr.mxu0 0.0
    %206 = vmatpush1.msra.mxu0 %v61
    %207 = vmatprep.subr.mxu0 0.0
    %208 = vmatpush1.msra.mxu0 %v62
    %209 = vmatprep.subr.mxu0 0.0
    %210 = vmatpush1.msra.mxu0 %v63
    %211 = vmatprep.subr.mxu0 0.0
    %212 = vmatpush1.msra.mxu0 %v64
    %213 = vmatprep.subr.mxu0 0.0
    %214 = vmatpush1.msra.mxu0 %v65
    %215 = vmatprep.subr.mxu0 0.0
    %216 = vmatpush1.msra.mxu0 %v66
    %217 = vmatprep.subr.mxu0 0.0
    %218 = vmatpush1.msra.mxu0 %v67
    %219 = vmatprep.subr.mxu0 0.0
    %220 = vmatpush1.msra.mxu0 %v68
    %221 = vmatprep.subr.mxu0 0.0
    %222 = vmatpush1.msra.mxu0 %v69
    %223 = vmatprep.subr.mxu0 0.0
    %224 = vmatpush1.msra.mxu0 %v70
    %225 = vmatprep.subr.mxu0 0.0
    %226 = vmatpush1.msra.mxu0 %v71
    %227 = vmatprep.subr.mxu0 0.0
    %228 = vmatpush1.msra.mxu0 %v72
    %229 = vmatprep.subr.mxu0 0.0
    %230 = vmatpush1.msra.mxu0 %v73
    %231 = vmatprep.subr.mxu0 0.0
    %232 = vmatpush1.msra.mxu0 %v74
    %233 = vmatprep.subr.mxu0 0.0
    %234 = vmatpush1.msra.mxu0 %v75
    %235 = vmatprep.subr.mxu0 0.0
    %236 = vmatpush1.msra.mxu0 %v76
    %237 = vmatprep.subr.mxu0 0.0
    %238 = vmatpush1.msra.mxu0 %v77
    %239 = vmatprep.subr.mxu0 0.0
    %240 = vmatpush1.msra.mxu0 %v78
    %241 = vmatprep.subr.mxu0 0.0
    %242 = vmatpush1.msra.mxu0 %v79
    %243 = vmatprep.subr.mxu0 0.0
    %244 = vmatpush1.msra.mxu0 %v80
    %245 = vmatprep.subr.mxu0 0.0
    %246 = vmatpush1.msra.mxu0 %v81
    %247 = vmatprep.subr.mxu0 0.0
    %248 = vmatpush1.msra.mxu0 %v82
    %249 = vmatprep.subr.mxu0 0.0
    %250 = vmatpush1.msra.mxu0 %v83
    %251 = vmatprep.subr.mxu0 0.0
    %252 = vmatpush1.msra.mxu0 %v84
    %253 = vmatprep.subr.mxu0 0.0
    %254 = vmatpush1.msra.mxu0 %v85
    %255 = vmatprep.mubr.f32.mxu0 %v176
    %256 = vmatmul.mubr.f32.gmra.mrb[0].mxu0 %v170
    %v257 = vpop.f32.mrb[0].mxu0
    %v258 = vadd.f32 0.0, %v257
    %v259 = vpop.f32.mrb[0].mxu0
    %260 = vdwg.mxu0
    %v261 = vmul.f32 %v258, 0.0034722222
    %262 = vmatprep.subr.mxu0 0.0
    %263 = vmatpush1.msra.mxu0 %v54
    %264 = vmatprep.subr.mxu0 0.0
    %265 = vmatpush1.msra.mxu0 %v55
    %266 = vmatprep.subr.mxu0 0.0
    %267 = vmatpush1.msra.mxu0 %v56
    %268 = vmatprep.subr.mxu0 0.0
    %269 = vmatpush1.msra.mxu0 %v57
    %270 = vmatprep.subr.mxu0 0.0
    %271 = vmatpush1.msra.mxu0 %v58
    %272 = vmatprep.subr.mxu0 0.0
    %273 = vmatpush1.msra.mxu0 %v59
    %274 = vmatprep.subr.mxu0 0.0
    %275 = vmatpush1.msra.mxu0 %v60
    %276 = vmatprep.subr.mxu0 0.0
    %277 = vmatpush1.msra.mxu0 %v61
    %278 = vmatprep.subr.mxu0 0.0
    %279 = vmatpush1.msra.mxu0 %v62
    %280 = vmatprep.subr.mxu0 0.0
    %281 = vmatpush1.msra.mxu0 %v63
    %282 = vmatprep.subr.mxu0 0.0
    %283 = vmatpush1.msra.mxu0 %v64
    %284 = vmatprep.subr.mxu0 0.0
    %285 = vmatpush1.msra.mxu0 %v65
    %286 = vmatprep.subr.mxu0 0.0
    %287 = vmatpush1.msra.mxu0 %v66
    %288 = vmatprep.subr.mxu0 0.0
    %289 = vmatpush1.msra.mxu0 %v67
    %290 = vmatprep.subr.mxu0 0.0
    %291 = vmatpush1.msra.mxu0 %v68
    %292 = vmatprep.subr.mxu0 0.0
    %293 = vmatpush1.msra.mxu0 %v69
    %294 = vmatprep.subr.mxu0 0.0
    %295 = vmatpush1.msra.mxu0 %v70
    %296 = vmatprep.subr.mxu0 0.0
    %297 = vmatpush1.msra.mxu0 %v71
    %298 = vmatprep.subr.mxu0 0.0
    %299 = vmatpush1.msra.mxu0 %v72
    %300 = vmatprep.subr.mxu0 0.0
    %301 = vmatpush1.msra.mxu0 %v73
    %302 = vmatprep.subr.mxu0 0.0
    %303 = vmatpush1.msra.mxu0 %v74
    %304 = vmatprep.subr.mxu0 0.0
    %305 = vmatpush1.msra.mxu0 %v75
    %306 = vmatprep.subr.mxu0 0.0
    %307 = vmatpush1.msra.mxu0 %v76
    %308 = vmatprep.subr.mxu0 0.0
    %309 = vmatpush1.msra.mxu0 %v77
    %310 = vmatprep.subr.mxu0 0.0
    %311 = vmatpush1.msra.mxu0 %v78
    %312 = vmatprep.subr.mxu0 0.0
    %313 = vmatpush1.msra.mxu0 %v79
    %314 = vmatprep.subr.mxu0 0.0
    %315 = vmatpush1.msra.mxu0 %v80
    %316 = vmatprep.subr.mxu0 0.0
    %317 = vmatpush1.msra.mxu0 %v81
    %318 = vmatprep.subr.mxu0 0.0
    %319 = vmatpush1.msra.mxu0 %v82
    %320 = vmatprep.subr.mxu0 0.0
    %321 = vmatpush1.msra.mxu0 %v83
    %322 = vmatprep.subr.mxu0 0.0
    %323 = vmatpush1.msra.mxu0 %v84
    %324 = vmatprep.subr.mxu0 0.0
    %325 = vmatpush1.msra.mxu0 %v85
    %326 = vmatprep.mubr.f32.mxu0 %v190
    %327 = vmatmul.mubr.f32.gmra.mrb[0].mxu0 %v184
    %v328 = vpop.f32.mrb[0].mxu0
    %v329 = vadd.f32 0.0, %v328
    %v330 = vpop.f32.mrb[0].mxu0
    %331 = vdwg.mxu0
    %v332 = vmul.f32 %v329, 0.0034722222
    %v333 = vmul.f32 %v261, %v261
    %v334 = vsub.f32 %v332, %v333
    %v335 = vadd.f32 %v334, 1e-05
    %v336 = vrsqrt.pop %v335
    %v337 = vmul.f32 %v88, %v336
    %v338 = vmul.f32 %v261, %v337
    %v339 = vsub.f32 %v89, %v338
    %vm340 = vcmask 64512
    %v342 = vsel %vm340, %v337, 0
    %344 = vmatprep.subr.mxu0 %v87
    %345 = vmatpush1.msra.mxu0 %v86
    %346 = vmatprep.subr.mxu0 0.0
    %347 = vmatpush1.msra.mxu0 0.0
    %348 = vmatprep.subr.mxu0 0.0
    %349 = vmatpush1.msra.mxu0 0.0
    %350 = vmatprep.subr.mxu0 0.0
    %351 = vmatpush1.msra.mxu0 0.0
    %352 = vmatprep.subr.mxu0 0.0
    %353 = vmatpush1.msra.mxu0 0.0
    %354 = vmatprep.subr.mxu0 0.0
    %355 = vmatpush1.msra.mxu0 0.0
    %356 = vmatprep.subr.mxu0 0.0
    %357 = vmatpush1.msra.mxu0 0.0
    %358 = vmatprep.subr.mxu0 0.0
    %359 = vmatpush1.msra.mxu0 0.0
    %360 = vmatprep.subr.mxu0 0.0
    %361 = vmatpush1.msra.mxu0 0.0
    %362 = vmatprep.subr.mxu0 0.0
    %363 = vmatpush1.msra.mxu0 0.0
    %364 = vmatprep.subr.mxu0 0.0
    %365 = vmatpush1.msra.mxu0 0.0
    %366 = vmatprep.subr.mxu0 0.0
    %367 = vmatpush1.msra.mxu0 0.0
    %368 = vmatprep.subr.mxu0 0.0
    %369 = vmatpush1.msra.mxu0 0.0
    %370 = vmatprep.subr.mxu0 0.0
    %371 = vmatpush1.msra.mxu0 0.0
    %372 = vmatprep.subr.mxu0 0.0
    %373 = vmatpush1.msra.mxu0 0.0
    %374 = vmatprep.subr.mxu0 0.0
    %375 = vmatpush1.msra.mxu0 0.0
    %376 = vmatprep.subr.mxu0 0.0
    %377 = vmatpush1.msra.mxu0 0.0
    %378 = vmatprep.subr.mxu0 0.0
    %379 = vmatpush1.msra.mxu0 0.0
    %380 = vmatprep.subr.mxu0 0.0
    %381 = vmatpush1.msra.mxu0 0.0
    %382 = vmatprep.subr.mxu0 0.0
    %383 = vmatpush1.msra.mxu0 0.0
    %384 = vmatprep.subr.mxu0 0.0
    %385 = vmatpush1.msra.mxu0 0.0
    %386 = vmatprep.subr.mxu0 0.0
    %387 = vmatpush1.msra.mxu0 0.0
    %388 = vmatprep.subr.mxu0 0.0
    %389 = vmatpush1.msra.mxu0 0.0
    %390 = vmatprep.subr.mxu0 0.0
    %391 = vmatpush1.msra.mxu0 0.0
    %392 = vmatprep.subr.mxu0 0.0
    %393 = vmatpush1.msra.mxu0 0.0
    %394 = vmatprep.subr.mxu0 0.0
    %395 = vmatpush1.msra.mxu0 0.0
    %396 = vmatprep.subr.mxu0 0.0
    %397 = vmatpush1.msra.mxu0 0.0
    %398 = vmatprep.subr.mxu0 0.0
    %399 = vmatpush1.msra.mxu0 0.0
    %400 = vmatprep.subr.mxu0 0.0
    %401 = vmatpush1.msra.mxu0 0.0
    %402 = vmatprep.subr.mxu0 0.0
    %403 = vmatpush1.msra.mxu0 0.0
    %404 = vmatprep.subr.mxu0 0.0
    %405 = vmatpush1.msra.mxu0 0.0
    %406 = vmatprep.subr.mxu0 0.0
    %407 = vmatpush1.msra.mxu0 0.0
    %408 = vmatprep.mubr.f32.mxu0 0.0
    %409 = vmatmul.mubr.f32.gmra.mrb[0].mxu0 %v342
    %v410 = vpop.f32.mrb[0].mxu0
    %v411 = vadd.f32 0.0, %v410
    %v412 = vpop.f32.mrb[0].mxu0
    %v413 = vadd.f32 0.0, %v412
    %414 = vdwg.mxu0
    %v416 = vsel %vm340, %v339, 0
    %418 = vmatprep.subr.mxu0 %v87
    %419 = vmatpush1.msra.mxu0 %v86
    %420 = vmatprep.subr.mxu0 0.0
    %421 = vmatpush1.msra.mxu0 0.0
    %422 = vmatprep.subr.mxu0 0.0
    %423 = vmatpush1.msra.mxu0 0.0
    %424 = vmatprep.subr.mxu0 0.0
    %425 = vmatpush1.msra.mxu0 0.0
    %426 = vmatprep.subr.mxu0 0.0
    %427 = vmatpush1.msra.mxu0 0.0
    %428 = vmatprep.subr.mxu0 0.0
    %429 = vmatpush1.msra.mxu0 0.0
    %430 = vmatprep.subr.mxu0 0.0
    %431 = vmatpush1.msra.mxu0 0.0
    %432 = vmatprep.subr.mxu0 0.0
    %433 = vmatpush1.msra.mxu0 0.0
    %434 = vmatprep.subr.mxu0 0.0
    %435 = vmatpush1.msra.mxu0 0.0
    %436 = vmatprep.subr.mxu0 0.0
    %437 = vmatpush1.msra.mxu0 0.0
    %438 = vmatprep.subr.mxu0 0.0
    %439 = vmatpush1.msra.mxu0 0.0
    %440 = vmatprep.subr.mxu0 0.0
    %441 = vmatpush1.msra.mxu0 0.0
    %442 = vmatprep.subr.mxu0 0.0
    %443 = vmatpush1.msra.mxu0 0.0
    %444 = vmatprep.subr.mxu0 0.0
    %445 = vmatpush1.msra.mxu0 0.0
    %446 = vmatprep.subr.mxu0 0.0
    %447 = vmatpush1.msra.mxu0 0.0
    %448 = vmatprep.subr.mxu0 0.0
    %449 = vmatpush1.msra.mxu0 0.0
    %450 = vmatprep.subr.mxu0 0.0
    %451 = vmatpush1.msra.mxu0 0.0
    %452 = vmatprep.subr.mxu0 0.0
    %453 = vmatpush1.msra.mxu0 0.0
    %454 = vmatprep.subr.mxu0 0.0
    %455 = vmatpush1.msra.mxu0 0.0
    %456 = vmatprep.subr.mxu0 0.0
    %457 = vmatpush1.msra.mxu0 0.0
    %458 = vmatprep.subr.mxu0 0.0
    %459 = vmatpush1.msra.mxu0 0.0
    %460 = vmatprep.subr.mxu0 0.0
    %461 = vmatpush1.msra.mxu0 0.0
    %462 = vmatprep.subr.mxu0 0.0
    %463 = vmatpush1.msra.mxu0 0.0
    %464 = vmatprep.subr.mxu0 0.0
    %465 = vmatpush1.msra.mxu0 0.0
    %466 = vmatprep.subr.mxu0 0.0
    %467 = vmatpush1.msra.mxu0 0.0
    %468 = vmatprep.subr.mxu0 0.0
    %469 = vmatpush1.msra.mxu0 0.0
    %470 = vmatprep.subr.mxu0 0.0
    %471 = vmatpush1.msra.mxu0 0.0
    %472 = vmatprep.subr.mxu0 0.0
    %473 = vmatpush1.msra.mxu0 0.0
    %474 = vmatprep.subr.mxu0 0.0
    %475 = vmatpush1.msra.mxu0 0.0
    %476 = vmatprep.subr.mxu0 0.0
    %477 = vmatpush1.msra.mxu0 0.0
    %478 = vmatprep.subr.mxu0 0.0
    %479 = vmatpush1.msra.mxu0 0.0
    %480 = vmatprep.subr.mxu0 0.0
    %481 = vmatpush1.msra.mxu0 0.0
    %482 = vmatprep.mubr.f32.mxu0 0.0
    %483 = vmatmul.mubr.f32.gmra.mrb[0].mxu0 %v416
    %v484 = vpop.f32.mrb[0].mxu0
    %v485 = vadd.f32 0.0, %v484
    %v486 = vpop.f32.mrb[0].mxu0
    %v487 = vadd.f32 0.0, %v486
    %488 = vdwg.mxu0
    %v489 = vlaneseq
    %v490 = vshrl.u32 %v489, 7
    %v491 = vsub.s32 0, %v490
    %v492 = vrot.slane %v411, %v491
    %v493 = vlaneseq
    %v494 = vshrl.u32 %v493, 7
    %v495 = vsub.s32 0, %v494
    %v496 = vrot.slane %v413, %v495
    %v497 = vmul.f32 %v161, %v492
    %v498 = vmul.f32 %v163, %v496
    %v499 = vlaneseq
    %v500 = vshrl.u32 %v499, 7
    %v501 = vsub.s32 0, %v500
    %v502 = vrot.slane %v485, %v501
    %v503 = vlaneseq
    %v504 = vshrl.u32 %v503, 7
    %v505 = vsub.s32 0, %v504
    %v506 = vrot.slane %v487, %v505
    %v507 = vadd.f32 %v497, %v502
    %v508 = vadd.f32 %v498, %v506
    %v509 = vmul.f32 %v507, 0.01
    %v510 = vmul.f32 %v508, 0.01
    %v511 = vmax.f32 %v507, %v509
    %v512 = vmax.f32 %v508, %v510
    %v513 = vld [vmem:[#allocation4 + $0x2b0] sm:$0xff]
    %v514 = vld [vmem:[#allocation4 + $0x2c0] sm:$0xff]
    %v515 = vld [vmem:[#allocation4 + $0x2d0] sm:$0xff]
    %v516 = vld [vmem:[#allocation4 + $0x2e0] sm:$0xff]
    %v517 = vld [vmem:[#allocation4 + $0x2f0] sm:$0xff]
    %v518 = vld [vmem:[#allocation4 + $0x300] sm:$0xff]
    %v519 = vld [vmem:[#allocation4 + $0x310] sm:$0xff]
    %v520 = vld [vmem:[#allocation4 + $0x320] sm:$0xff]
    %v521 = vld [vmem:[#allocation4 + $0x330] sm:$0xff]
    %v522 = vld [vmem:[#allocation4 + $0x340] sm:$0xff]
    %v523 = vld [vmem:[#allocation4 + $0x350] sm:$0xff]
    %v524 = vld [vmem:[#allocation4 + $0x360] sm:$0xff]
    %v525 = vld [vmem:[#allocation4 + $0x370] sm:$0xff]
    %v526 = vld [vmem:[#allocation4 + $0x380] sm:$0xff]
    %v527 = vld [vmem:[#allocation4 + $0x390] sm:$0xff]
    %v528 = vld [vmem:[#allocation4 + $0x3a0] sm:$0xff]
    %v529 = vld [vmem:[#allocation4 + $0x3b0] sm:$0xff]
    %v530 = vld [vmem:[#allocation4 + $0x3c0] sm:$0xff]
    %v531 = vld [vmem:[#allocation4 + $0x3d0] sm:$0xff]
    %v532 = vld [vmem:[#allocation4 + $0x3e0] sm:$0xff]
    %v533 = vld [vmem:[#allocation4 + $0x3f0] sm:$0xff]
    %v534 = vld [vmem:[#allocation4 + $0x400] sm:$0xff]
    %v535 = vld [vmem:[#allocation4 + $0x410] sm:$0xff]
    %v536 = vld [vmem:[#allocation4 + $0x420] sm:$0xff]
    %v537 = vld [vmem:[#allocation4 + $0x430] sm:$0xff]
    %v538 = vld [vmem:[#allocation4 + $0x440] sm:$0xff]
    %v539 = vld [vmem:[#allocation4 + $0x450] sm:$0xff]
    %v540 = vld [vmem:[#allocation4 + $0x460] sm:$0xff]
    %v541 = vld [vmem:[#allocation4 + $0x470] sm:$0xff]
    %v542 = vld [vmem:[#allocation4 + $0x480] sm:$0xff]
    %v543 = vld [vmem:[#allocation4 + $0x490] sm:$0xff]
    %v544 = vld [vmem:[#allocation4 + $0x4a0] sm:$0xff]
    %v545 = vld [vmem:[#allocation4 + $0x4b0] sm:$0xff]
    %v546 = vld [vmem:[#allocation4 + $0x4c0] sm:$0xff]
    %v547 = vld [vmem:[#allocation4 + $0x4d0] sm:$0xff]
    %v548 = vld [vmem:[#allocation4 + $0x4e0] sm:$0xff]
    %v549 = vld [vmem:[#allocation4 + $0x4f0] sm:$0xff]
    %v550 = vld [vmem:[#allocation4 + $0x500] sm:$0xff]
    %v551 = vld [vmem:[#allocation4 + $0x510] sm:$0xff]
    %v552 = vld [vmem:[#allocation4 + $0x520] sm:$0xff]
    %v553 = vld [vmem:[#allocation4 + $0x530] sm:$0xff]
    %v554 = vld [vmem:[#allocation4 + $0x540] sm:$0xff]
    %v555 = vld [vmem:[#allocation4 + $0x550] sm:$0xff]
    %v556 = vld [vmem:[#allocation4 + $0x560] sm:$0xff]
    %v557 = vld [vmem:[#allocation4 + $0x570] sm:$0xff]
    %v558 = vld [vmem:[#allocation4 + $0x580] sm:$0xff]
    %v559 = vld [vmem:[#allocation4 + $0x590] sm:$0xff]
    %v560 = vld [vmem:[#allocation4 + $0x5a0] sm:$0xff]
    %v561 = vld [vmem:[#allocation4 + $0x5b0] sm:$0xff]
    %v562 = vld [vmem:[#allocation4 + $0x5c0] ss:$0 sm:$0xff]
    %v563 = vld [vmem:[#allocation4 + $0x5d0] ss:$0 sm:$0xff]
    %564 = vmatprep.subr.mxu0 0.0
    %565 = vmatpush1.msra.mxu0 %v513
    %566 = vmatprep.subr.mxu0 0.0
    %567 = vmatpush1.msra.mxu0 %v514
    %568 = vmatprep.subr.mxu0 0.0
    %569 = vmatpush1.msra.mxu0 %v515
    %570 = vmatprep.subr.mxu0 0.0
    %571 = vmatpush1.msra.mxu0 %v516
    %572 = vmatprep.subr.mxu0 0.0
    %573 = vmatpush1.msra.mxu0 %v517
    %574 = vmatprep.subr.mxu0 0.0
    %575 = vmatpush1.msra.mxu0 %v518
    %576 = vmatprep.subr.mxu0 0.0
    %577 = vmatpush1.msra.mxu0 %v519
    %578 = vmatprep.subr.mxu0 0.0
    %579 = vmatpush1.msra.mxu0 %v520
    %580 = vmatprep.subr.mxu0 0.0
    %581 = vmatpush1.msra.mxu0 %v521
    %582 = vmatprep.subr.mxu0 0.0
    %583 = vmatpush1.msra.mxu0 %v522
    %584 = vmatprep.subr.mxu0 0.0
    %585 = vmatpush1.msra.mxu0 %v523
    %586 = vmatprep.subr.mxu0 0.0
    %587 = vmatpush1.msra.mxu0 %v524
    %588 = vmatprep.subr.mxu0 0.0
    %589 = vmatpush1.msra.mxu0 %v525
    %590 = vmatprep.subr.mxu0 0.0
    %591 = vmatpush1.msra.mxu0 %v526
    %592 = vmatprep.subr.mxu0 0.0
    %593 = vmatpush1.msra.mxu0 %v527
    %594 = vmatprep.subr.mxu0 0.0
    %595 = vmatpush1.msra.mxu0 %v528
    %596 = vmatprep.subr.mxu0 0.0
    %597 = vmatpush1.msra.mxu0 %v529
    %598 = vmatprep.subr.mxu0 0.0
    %599 = vmatpush1.msra.mxu0 %v530
    %600 = vmatprep.subr.mxu0 0.0
    %601 = vmatpush1.msra.mxu0 %v531
    %602 = vmatprep.subr.mxu0 0.0
    %603 = vmatpush1.msra.mxu0 %v532
    %604 = vmatprep.subr.mxu0 0.0
    %605 = vmatpush1.msra.mxu0 %v533
    %606 = vmatprep.subr.mxu0 0.0
    %607 = vmatpush1.msra.mxu0 %v534
    %608 = vmatprep.subr.mxu0 0.0
    %609 = vmatpush1.msra.mxu0 %v535
    %610 = vmatprep.subr.mxu0 0.0
    %611 = vmatpush1.msra.mxu0 %v536
    %612 = vmatprep.subr.mxu0 0.0
    %613 = vmatpush1.msra.mxu0 %v537
    %614 = vmatprep.subr.mxu0 0.0
    %615 = vmatpush1.msra.mxu0 %v538
    %616 = vmatprep.subr.mxu0 0.0
    %617 = vmatpush1.msra.mxu0 %v539
    %618 = vmatprep.subr.mxu0 0.0
    %619 = vmatpush1.msra.mxu0 %v540
    %620 = vmatprep.subr.mxu0 0.0
    %621 = vmatpush1.msra.mxu0 %v541
    %622 = vmatprep.subr.mxu0 0.0
    %623 = vmatpush1.msra.mxu0 %v542
    %624 = vmatprep.subr.mxu0 0.0
    %625 = vmatpush1.msra.mxu0 %v543
    %626 = vmatprep.subr.mxu0 0.0
    %627 = vmatpush1.msra.mxu0 %v544
    %628 = vmatprep.mubr.f32.mxu0 %v512
    %629 = vmatmul.mubr.f32.gmra.mrb[0].mxu0 %v511
    %v630 = vpop.f32.mrb[0].mxu0
    %v631 = vadd.f32 0.0, %v630
    %v632 = vpop.f32.mrb[0].mxu0
    %633 = vdwg.mxu0
    %v634 = vrot.slane %v631, 4
    %v635 = vadd.f32 %v631, %v634
    %v636 = vrot.slane %v635, 2
    %v637 = vadd.f32 %v635, %v636
    %v638 = vrot.slane %v637, 1
    %v639 = vadd.f32 %v637, %v638
    %v640 = vmul.f32 %v631, %v631
    %v641 = vrot.slane %v640, 4
    %v642 = vadd.f32 %v640, %v641
    %v643 = vrot.slane %v642, 2
    %v644 = vadd.f32 %v642, %v643
    %v645 = vrot.slane %v644, 1
    %v646 = vadd.f32 %v644, %v645
    %647 = vmatprep.subr.mxu0 0.0
    %648 = vmatpush1.msra.mxu0 %v545
    %649 = vmatprep.subr.mxu0 0.0
    %650 = vmatpush1.msra.mxu0 %v546
    %651 = vmatprep.subr.mxu0 0.0
    %652 = vmatpush1.msra.mxu0 %v547
    %653 = vmatprep.subr.mxu0 0.0
    %654 = vmatpush1.msra.mxu0 %v548
    %655 = vmatprep.subr.mxu0 0.0
    %656 = vmatpush1.msra.mxu0 %v549
    %657 = vmatprep.subr.mxu0 0.0
    %658 = vmatpush1.msra.mxu0 %v550
    %659 = vmatprep.subr.mxu0 0.0
    %660 = vmatpush1.msra.mxu0 %v551
    %661 = vmatprep.subr.mxu0 0.0
    %662 = vmatpush1.msra.mxu0 %v552
    %663 = vmatprep.subr.mxu0 0.0
    %664 = vmatpush1.msra.mxu0 %v553
    %665 = vmatprep.subr.mxu0 0.0
    %666 = vmatpush1.msra.mxu0 %v554
    %667 = vmatprep.subr.mxu0 0.0
    %668 = vmatpush1.msra.mxu0 %v555
    %669 = vmatprep.subr.mxu0 0.0
    %670 = vmatpush1.msra.mxu0 %v556
    %671 = vmatprep.subr.mxu0 0.0
    %672 = vmatpush1.msra.mxu0 %v557
    %673 = vmatprep.subr.mxu0 0.0
    %674 = vmatpush1.msra.mxu0 %v558
    %675 = vmatprep.subr.mxu0 0.0
    %676 = vmatpush1.msra.mxu0 %v559
    %677 = vmatprep.subr.mxu0 0.0
    %678 = vmatpush1.msra.mxu0 %v560
    %679 = vmatprep.subr.mxu0 0.0
    %680 = vmatpush1.msra.mxu0 0.0
    %681 = vmatprep.subr.mxu0 0.0
    %682 = vmatpush1.msra.mxu0 0.0
    %683 = vmatprep.subr.mxu0 0.0
    %684 = vmatpush1.msra.mxu0 0.0
    %685 = vmatprep.subr.mxu0 0.0
    %686 = vmatpush1.msra.mxu0 0.0
    %687 = vmatprep.subr.mxu0 0.0
    %688 = vmatpush1.msra.mxu0 0.0
    %689 = vmatprep.subr.mxu0 0.0
    %690 = vmatpush1.msra.mxu0 0.0
    %691 = vmatprep.subr.mxu0 0.0
    %692 = vmatpush1.msra.mxu0 0.0
    %693 = vmatprep.subr.mxu0 0.0
    %694 = vmatpush1.msra.mxu0 0.0
    %695 = vmatprep.subr.mxu0 0.0
    %696 = vmatpush1.msra.mxu0 0.0
    %697 = vmatprep.subr.mxu0 0.0
    %698 = vmatpush1.msra.mxu0 0.0
    %699 = vmatprep.subr.mxu0 0.0
    %700 = vmatpush1.msra.mxu0 0.0
    %701 = vmatprep.subr.mxu0 0.0
    %702 = vmatpush1.msra.mxu0 0.0
    %703 = vmatprep.subr.mxu0 0.0
    %704 = vmatpush1.msra.mxu0 0.0
    %705 = vmatprep.subr.mxu0 0.0
    %706 = vmatpush1.msra.mxu0 0.0
    %707 = vmatprep.subr.mxu0 0.0
    %708 = vmatpush1.msra.mxu0 0.0
    %709 = vmatprep.subr.mxu0 0.0
    %710 = vmatpush1.msra.mxu0 0.0
    %711 = vmatprep.mubr.f32.mxu0 0.0
    %712 = vmatmul.mubr.f32.gmra.mrb[0].mxu0 %v639
    %v713 = vpop.f32.mrb[0].mxu0
    %v714 = vadd.f32 0.0, %v713
    %v715 = vpop.f32.mrb[0].mxu0
    %716 = vdwg.mxu0
    %v717 = vmul.f32 %v714, 0.0078125
    %718 = vmatprep.subr.mxu0 0.0
    %719 = vmatpush1.msra.mxu0 %v545
    %720 = vmatprep.subr.mxu0 0.0
    %721 = vmatpush1.msra.mxu0 %v546
    %722 = vmatprep.subr.mxu0 0.0
    %723 = vmatpush1.msra.mxu0 %v547
    %724 = vmatprep.subr.mxu0 0.0
    %725 = vmatpush1.msra.mxu0 %v548
    %726 = vmatprep.subr.mxu0 0.0
    %727 = vmatpush1.msra.mxu0 %v549
    %728 = vmatprep.subr.mxu0 0.0
    %729 = vmatpush1.msra.mxu0 %v550
    %730 = vmatprep.subr.mxu0 0.0
    %731 = vmatpush1.msra.mxu0 %v551
    %732 = vmatprep.subr.mxu0 0.0
    %733 = vmatpush1.msra.mxu0 %v552
    %734 = vmatprep.subr.mxu0 0.0
    %735 = vmatpush1.msra.mxu0 %v553
    %736 = vmatprep.subr.mxu0 0.0
    %737 = vmatpush1.msra.mxu0 %v554
    %738 = vmatprep.subr.mxu0 0.0
    %739 = vmatpush1.msra.mxu0 %v555
    %740 = vmatprep.subr.mxu0 0.0
    %741 = vmatpush1.msra.mxu0 %v556
    %742 = vmatprep.subr.mxu0 0.0
    %743 = vmatpush1.msra.mxu0 %v557
    %744 = vmatprep.subr.mxu0 0.0
    %745 = vmatpush1.msra.mxu0 %v558
    %746 = vmatprep.subr.mxu0 0.0
    %747 = vmatpush1.msra.mxu0 %v559
    %748 = vmatprep.subr.mxu0 0.0
    %749 = vmatpush1.msra.mxu0 %v560
    %750 = vmatprep.subr.mxu0 0.0
    %751 = vmatpush1.msra.mxu0 0.0
    %752 = vmatprep.subr.mxu0 0.0
    %753 = vmatpush1.msra.mxu0 0.0
    %754 = vmatprep.subr.mxu0 0.0
    %755 = vmatpush1.msra.mxu0 0.0
    %756 = vmatprep.subr.mxu0 0.0
    %757 = vmatpush1.msra.mxu0 0.0
    %758 = vmatprep.subr.mxu0 0.0
    %759 = vmatpush1.msra.mxu0 0.0
    %760 = vmatprep.subr.mxu0 0.0
    %761 = vmatpush1.msra.mxu0 0.0
    %762 = vmatprep.subr.mxu0 0.0
    %763 = vmatpush1.msra.mxu0 0.0
    %764 = vmatprep.subr.mxu0 0.0
    %765 = vmatpush1.msra.mxu0 0.0
    %766 = vmatprep.subr.mxu0 0.0
    %767 = vmatpush1.msra.mxu0 0.0
    %768 = vmatprep.subr.mxu0 0.0
    %769 = vmatpush1.msra.mxu0 0.0
    %770 = vmatprep.subr.mxu0 0.0
    %771 = vmatpush1.msra.mxu0 0.0
    %772 = vmatprep.subr.mxu0 0.0
    %773 = vmatpush1.msra.mxu0 0.0
    %774 = vmatprep.subr.mxu0 0.0
    %775 = vmatpush1.msra.mxu0 0.0
    %776 = vmatprep.subr.mxu0 0.0
    %777 = vmatpush1.msra.mxu0 0.0
    %778 = vmatprep.subr.mxu0 0.0
    %779 = vmatpush1.msra.mxu0 0.0
    %780 = vmatprep.subr.mxu0 0.0
    %781 = vmatpush1.msra.mxu0 0.0
    %782 = vmatprep.mubr.f32.mxu0 0.0
    %783 = vmatmul.mubr.f32.gmra.mrb[0].mxu0 %v646
    %v784 = vpop.f32.mrb[0].mxu0
    %v785 = vadd.f32 0.0, %v784
    %v786 = vpop.f32.mrb[0].mxu0
    %787 = vdwg.mxu0
    %v788 = vmul.f32 %v785, 0.0078125
    %v789 = vmul.f32 %v717, %v717
    %v790 = vsub.f32 %v788, %v789
    %v791 = vadd.f32 %v790, 1e-05
    %v792 = vrsqrt.pop %v791
    %v793 = vmul.f32 %v562, %v792
    %v794 = vmul.f32 %v717, %v793
    %v795 = vsub.f32 %v563, %v794
    %v797 = vsel %vm340, %v793, 0
    %799 = vmatprep.subr.mxu0 0.0
    %800 = vmatpush1.msra.mxu0 %v561
    %801 = vmatprep.subr.mxu0 0.0
    %802 = vmatpush1.msra.mxu0 0.0
    %803 = vmatprep.subr.mxu0 0.0
    %804 = vmatpush1.msra.mxu0 0.0
    %805 = vmatprep.subr.mxu0 0.0
    %806 = vmatpush1.msra.mxu0 0.0
    %807 = vmatprep.subr.mxu0 0.0
    %808 = vmatpush1.msra.mxu0 0.0
    %809 = vmatprep.subr.mxu0 0.0
    %810 = vmatpush1.msra.mxu0 0.0
    %811 = vmatprep.subr.mxu0 0.0
    %812 = vmatpush1.msra.mxu0 0.0
    %813 = vmatprep.subr.mxu0 0.0
    %814 = vmatpush1.msra.mxu0 0.0
    %815 = vmatprep.subr.mxu0 0.0
    %816 = vmatpush1.msra.mxu0 0.0
    %817 = vmatprep.subr.mxu0 0.0
    %818 = vmatpush1.msra.mxu0 0.0
    %819 = vmatprep.subr.mxu0 0.0
    %820 = vmatpush1.msra.mxu0 0.0
    %821 = vmatprep.subr.mxu0 0.0
    %822 = vmatpush1.msra.mxu0 0.0
    %823 = vmatprep.subr.mxu0 0.0
    %824 = vmatpush1.msra.mxu0 0.0
    %825 = vmatprep.subr.mxu0 0.0
    %826 = vmatpush1.msra.mxu0 0.0
    %827 = vmatprep.subr.mxu0 0.0
    %828 = vmatpush1.msra.mxu0 0.0
    %829 = vmatprep.subr.mxu0 0.0
    %830 = vmatpush1.msra.mxu0 0.0
    %831 = vmatprep.subr.mxu0 0.0
    %832 = vmatpush1.msra.mxu0 0.0
    %833 = vmatprep.subr.mxu0 0.0
    %834 = vmatpush1.msra.mxu0 0.0
    %835 = vmatprep.subr.mxu0 0.0
    %836 = vmatpush1.msra.mxu0 0.0
    %837 = vmatprep.subr.mxu0 0.0
    %838 = vmatpush1.msra.mxu0 0.0
    %839 = vmatprep.subr.mxu0 0.0
    %840 = vmatpush1.msra.mxu0 0.0
    %841 = vmatprep.subr.mxu0 0.0
    %842 = vmatpush1.msra.mxu0 0.0
    %843 = vmatprep.subr.mxu0 0.0
    %844 = vmatpush1.msra.mxu0 0.0
    %845 = vmatprep.subr.mxu0 0.0
    %846 = vmatpush1.msra.mxu0 0.0
    %847 = vmatprep.subr.mxu0 0.0
    %848 = vmatpush1.msra.mxu0 0.0
    %849 = vmatprep.subr.mxu0 0.0
    %850 = vmatpush1.msra.mxu0 0.0
    %851 = vmatprep.subr.mxu0 0.0
    %852 = vmatpush1.msra.mxu0 0.0
    %853 = vmatprep.subr.mxu0 0.0
    %854 = vmatpush1.msra.mxu0 0.0
    %855 = vmatprep.subr.mxu0 0.0
    %856 = vmatpush1.msra.mxu0 0.0
    %857 = vmatprep.subr.mxu0 0.0
    %858 = vmatpush1.msra.mxu0 0.0
    %859 = vmatprep.subr.mxu0 0.0
    %860 = vmatpush1.msra.mxu0 0.0
    %861 = vmatprep.subr.mxu0 0.0
    %862 = vmatpush1.msra.mxu0 0.0
    %863 = vmatprep.mubr.f32.mxu0 0.0
    %864 = vmatmul.mubr.f32.gmra.mrb[0].mxu0 %v797
    %v865 = vpop.f32.mrb[0].mxu0
    %v866 = vadd.f32 0.0, %v865
    %v867 = vpop.f32.mrb[0].mxu0
    %868 = vdwg.mxu0
    %v870 = vsel %vm340, %v795, 0
    %872 = vmatprep.subr.mxu0 0.0
    %873 = vmatpush1.msra.mxu0 %v561
    %874 = vmatprep.subr.mxu0 0.0
    %875 = vmatpush1.msra.mxu0 0.0
    %876 = vmatprep.subr.mxu0 0.0
    %877 = vmatpush1.msra.mxu0 0.0
    %878 = vmatprep.subr.mxu0 0.0
    %879 = vmatpush1.msra.mxu0 0.0
    %880 = vmatprep.subr.mxu0 0.0
    %881 = vmatpush1.msra.mxu0 0.0
    %882 = vmatprep.subr.mxu0 0.0
    %883 = vmatpush1.msra.mxu0 0.0
    %884 = vmatprep.subr.mxu0 0.0
    %885 = vmatpush1.msra.mxu0 0.0
    %886 = vmatprep.subr.mxu0 0.0
    %887 = vmatpush1.msra.mxu0 0.0
    %888 = vmatprep.subr.mxu0 0.0
    %889 = vmatpush1.msra.mxu0 0.0
    %890 = vmatprep.subr.mxu0 0.0
    %891 = vmatpush1.msra.mxu0 0.0
    %892 = vmatprep.subr.mxu0 0.0
    %893 = vmatpush1.msra.mxu0 0.0
    %894 = vmatprep.subr.mxu0 0.0
    %895 = vmatpush1.msra.mxu0 0.0
    %896 = vmatprep.subr.mxu0 0.0
    %897 = vmatpush1.msra.mxu0 0.0
    %898 = vmatprep.subr.mxu0 0.0
    %899 = vmatpush1.msra.mxu0 0.0
    %900 = vmatprep.subr.mxu0 0.0
    %901 = vmatpush1.msra.mxu0 0.0
    %902 = vmatprep.subr.mxu0 0.0
    %903 = vmatpush1.msra.mxu0 0.0
    %904 = vmatprep.subr.mxu0 0.0
    %905 = vmatpush1.msra.mxu0 0.0
    %906 = vmatprep.subr.mxu0 0.0
    %907 = vmatpush1.msra.mxu0 0.0
    %908 = vmatprep.subr.mxu0 0.0
    %909 = vmatpush1.msra.mxu0 0.0
    %910 = vmatprep.subr.mxu0 0.0
    %911 = vmatpush1.msra.mxu0 0.0
    %912 = vmatprep.subr.mxu0 0.0
    %913 = vmatpush1.msra.mxu0 0.0
    %914 = vmatprep.subr.mxu0 0.0
    %915 = vmatpush1.msra.mxu0 0.0
    %916 = vmatprep.subr.mxu0 0.0
    %917 = vmatpush1.msra.mxu0 0.0
    %918 = vmatprep.subr.mxu0 0.0
    %919 = vmatpush1.msra.mxu0 0.0
    %920 = vmatprep.subr.mxu0 0.0
    %921 = vmatpush1.msra.mxu0 0.0
    %922 = vmatprep.subr.mxu0 0.0
    %923 = vmatpush1.msra.mxu0 0.0
    %924 = vmatprep.subr.mxu0 0.0
    %925 = vmatpush1.msra.mxu0 0.0
    %926 = vmatprep.subr.mxu0 0.0
    %927 = vmatpush1.msra.mxu0 0.0
    %928 = vmatprep.subr.mxu0 0.0
    %929 = vmatpush1.msra.mxu0 0.0
    %930 = vmatprep.subr.mxu0 0.0
    %931 = vmatpush1.msra.mxu0 0.0
    %932 = vmatprep.subr.mxu0 0.0
    %933 = vmatpush1.msra.mxu0 0.0
    %934 = vmatprep.subr.mxu0 0.0
    %935 = vmatpush1.msra.mxu0 0.0
    %936 = vmatprep.mubr.f32.mxu0 0.0
    %937 = vmatmul.mubr.f32.gmra.mrb[0].mxu0 %v870
    %v938 = vpop.f32.mrb[0].mxu0
    %v939 = vadd.f32 0.0, %v938
    %v940 = vpop.f32.mrb[0].mxu0
    %941 = vdwg.mxu0
    %v942 = vlaneseq
    %v943 = vshrl.u32 %v942, 7
    %v944 = vsub.s32 0, %v943
    %v945 = vrot.slane %v866, %v944
    %v946 = vmul.f32 %v631, %v945
    %v947 = vlaneseq
    %v948 = vshrl.u32 %v947, 7
    %v949 = vsub.s32 0, %v948
    %v950 = vrot.slane %v939, %v949
    %v951 = vadd.f32 %v946, %v950
    %v952 = vmul.f32 %v951, 0.01
    %v953 = vmax.f32 %v951, %v952
    %v954 = vld [vmem:[#allocation4 + $0x5e0] sm:$0xff]
    %v955 = vld [vmem:[#allocation4 + $0x5f0] sm:$0xff]
    %v956 = vld [vmem:[#allocation4 + $0x600] sm:$0xff]
    %v957 = vld [vmem:[#allocation4 + $0x610] sm:$0xff]
    %v958 = vld [vmem:[#allocation4 + $0x620] sm:$0xff]
    %v959 = vld [vmem:[#allocation4 + $0x630] sm:$0xff]
    %v960 = vld [vmem:[#allocation4 + $0x640] sm:$0xff]
    %v961 = vld [vmem:[#allocation4 + $0x650] sm:$0xff]
    %v962 = vld [vmem:[#allocation4 + $0x660] sm:$0xff]
    %v963 = vld [vmem:[#allocation4 + $0x670] sm:$0xff]
    %v964 = vld [vmem:[#allocation4 + $0x680] sm:$0xff]
    %v965 = vld [vmem:[#allocation4 + $0x690] sm:$0xff]
    %v966 = vld [vmem:[#allocation4 + $0x6a0] sm:$0xff]
    %v967 = vld [vmem:[#allocation4 + $0x6b0] sm:$0xff]
    %v968 = vld [vmem:[#allocation4 + $0x6c0] sm:$0xff]
    %v969 = vld [vmem:[#allocation4 + $0x6d0] sm:$0xff]
    %v970 = vld [vmem:[#allocation4 + $0x6e0] sm:$0xff]
    %v971 = vld [vmem:[#allocation4 + $0x6f0] sm:$0xff]
    %v972 = vld [vmem:[#allocation4 + $0x700] sm:$0xff]
    %v973 = vld [vmem:[#allocation4 + $0x710] sm:$0xff]
    %v974 = vld [vmem:[#allocation4 + $0x720] sm:$0xff]
    %v975 = vld [vmem:[#allocation4 + $0x730] sm:$0xff]
    %v976 = vld [vmem:[#allocation4 + $0x740] sm:$0xff]
    %v977 = vld [vmem:[#allocation4 + $0x750] sm:$0xff]
    %v978 = vld [vmem:[#allocation4 + $0x760] sm:$0xff]
    %v979 = vld [vmem:[#allocation4 + $0x770] sm:$0xff]
    %v980 = vld [vmem:[#allocation4 + $0x780] sm:$0xff]
    %v981 = vld [vmem:[#allocation4 + $0x790] sm:$0xff]
    %v982 = vld [vmem:[#allocation4 + $0x7a0] sm:$0xff]
    %v983 = vld [vmem:[#allocation4 + $0x7b0] sm:$0xff]
    %v984 = vld [vmem:[#allocation4 + $0x7c0] sm:$0xff]
    %v985 = vld [vmem:[#allocation4 + $0x7d0] sm:$0xff]
    %v986 = vld [vmem:[#allocation4 + $0x7e0] sm:$0xff]
    %v987 = vld [vmem:[#allocation4 + $0x7f0] sm:$0xff]
    %v988 = vld [vmem:[#allocation4 + $0x800] ss:$0 sm:$0xff]
    %v989 = vld [vmem:[#allocation4 + $0x810] ss:$0 sm:$0xff]
    %990 = vmatprep.subr.mxu0 0.0
    %991 = vmatpush1.msra.mxu0 %v954
    %992 = vmatprep.subr.mxu0 0.0
    %993 = vmatpush1.msra.mxu0 %v955
    %994 = vmatprep.subr.mxu0 0.0
    %995 = vmatpush1.msra.mxu0 %v956
    %996 = vmatprep.subr.mxu0 0.0
    %997 = vmatpush1.msra.mxu0 %v957
    %998 = vmatprep.subr.mxu0 0.0
    %999 = vmatpush1.msra.mxu0 %v958
    %1000 = vmatprep.subr.mxu0 0.0
    %1001 = vmatpush1.msra.mxu0 %v959
    %1002 = vmatprep.subr.mxu0 0.0
    %1003 = vmatpush1.msra.mxu0 %v960
    %1004 = vmatprep.subr.mxu0 0.0
    %1005 = vmatpush1.msra.mxu0 %v961
    %1006 = vmatprep.subr.mxu0 0.0
    %1007 = vmatpush1.msra.mxu0 %v962
    %1008 = vmatprep.subr.mxu0 0.0
    %1009 = vmatpush1.msra.mxu0 %v963
    %1010 = vmatprep.subr.mxu0 0.0
    %1011 = vmatpush1.msra.mxu0 %v964
    %1012 = vmatprep.subr.mxu0 0.0
    %1013 = vmatpush1.msra.mxu0 %v965
    %1014 = vmatprep.subr.mxu0 0.0
    %1015 = vmatpush1.msra.mxu0 %v966
    %1016 = vmatprep.subr.mxu0 0.0
    %1017 = vmatpush1.msra.mxu0 %v967
    %1018 = vmatprep.subr.mxu0 0.0
    %1019 = vmatpush1.msra.mxu0 %v968
    %1020 = vmatprep.subr.mxu0 0.0
    %1021 = vmatpush1.msra.mxu0 %v969
    %1022 = vmatprep.subr.mxu0 0.0
    %1023 = vmatpush1.msra.mxu0 0.0
    %1024 = vmatprep.subr.mxu0 0.0
    %1025 = vmatpush1.msra.mxu0 0.0
    %1026 = vmatprep.subr.mxu0 0.0
    %1027 = vmatpush1.msra.mxu0 0.0
    %1028 = vmatprep.subr.mxu0 0.0
    %1029 = vmatpush1.msra.mxu0 0.0
    %1030 = vmatprep.subr.mxu0 0.0
    %1031 = vmatpush1.msra.mxu0 0.0
    %1032 = vmatprep.subr.mxu0 0.0
    %1033 = vmatpush1.msra.mxu0 0.0
    %1034 = vmatprep.subr.mxu0 0.0
    %1035 = vmatpush1.msra.mxu0 0.0
    %1036 = vmatprep.subr.mxu0 0.0
    %1037 = vmatpush1.msra.mxu0 0.0
    %1038 = vmatprep.subr.mxu0 0.0
    %1039 = vmatpush1.msra.mxu0 0.0
    %1040 = vmatprep.subr.mxu0 0.0
    %1041 = vmatpush1.msra.mxu0 0.0
    %1042 = vmatprep.subr.mxu0 0.0
    %1043 = vmatpush1.msra.mxu0 0.0
    %1044 = vmatprep.subr.mxu0 0.0
    %1045 = vmatpush1.msra.mxu0 0.0
    %1046 = vmatprep.subr.mxu0 0.0
    %1047 = vmatpush1.msra.mxu0 0.0
    %1048 = vmatprep.subr.mxu0 0.0
    %1049 = vmatpush1.msra.mxu0 0.0
    %1050 = vmatprep.subr.mxu0 0.0
    %1051 = vmatpush1.msra.mxu0 0.0
    %1052 = vmatprep.subr.mxu0 0.0
    %1053 = vmatpush1.msra.mxu0 0.0
    %1054 = vmatprep.mubr.f32.mxu0 0.0
    %1055 = vmatmul.mubr.f32.gmra.mrb[0].mxu0 %v953
    %v1056 = vpop.f32.mrb[0].mxu0
    %v1057 = vadd.f32 0.0, %v1056
    %v1058 = vpop.f32.mrb[0].mxu0
    %1059 = vdwg.mxu0
    %v1060 = vrot.slane %v1057, 4
    %v1061 = vadd.f32 %v1057, %v1060
    %v1062 = vrot.slane %v1061, 2
    %v1063 = vadd.f32 %v1061, %v1062
    %v1064 = vrot.slane %v1063, 1
    %v1065 = vadd.f32 %v1063, %v1064
    %v1066 = vmul.f32 %v1057, %v1057
    %v1067 = vrot.slane %v1066, 4
    %v1068 = vadd.f32 %v1066, %v1067
    %v1069 = vrot.slane %v1068, 2
    %v1070 = vadd.f32 %v1068, %v1069
    %v1071 = vrot.slane %v1070, 1
    %v1072 = vadd.f32 %v1070, %v1071
    %1073 = vmatprep.subr.mxu0 0.0
    %1074 = vmatpush1.msra.mxu0 %v970
    %1075 = vmatprep.subr.mxu0 0.0
    %1076 = vmatpush1.msra.mxu0 %v971
    %1077 = vmatprep.subr.mxu0 0.0
    %1078 = vmatpush1.msra.mxu0 %v972
    %1079 = vmatprep.subr.mxu0 0.0
    %1080 = vmatpush1.msra.mxu0 %v973
    %1081 = vmatprep.subr.mxu0 0.0
    %1082 = vmatpush1.msra.mxu0 %v974
    %1083 = vmatprep.subr.mxu0 0.0
    %1084 = vmatpush1.msra.mxu0 %v975
    %1085 = vmatprep.subr.mxu0 0.0
    %1086 = vmatpush1.msra.mxu0 %v976
    %1087 = vmatprep.subr.mxu0 0.0
    %1088 = vmatpush1.msra.mxu0 %v977
    %1089 = vmatprep.subr.mxu0 0.0
    %1090 = vmatpush1.msra.mxu0 %v978
    %1091 = vmatprep.subr.mxu0 0.0
    %1092 = vmatpush1.msra.mxu0 %v979
    %1093 = vmatprep.subr.mxu0 0.0
    %1094 = vmatpush1.msra.mxu0 %v980
    %1095 = vmatprep.subr.mxu0 0.0
    %1096 = vmatpush1.msra.mxu0 %v981
    %1097 = vmatprep.subr.mxu0 0.0
    %1098 = vmatpush1.msra.mxu0 %v982
    %1099 = vmatprep.subr.mxu0 0.0
    %1100 = vmatpush1.msra.mxu0 %v983
    %1101 = vmatprep.subr.mxu0 0.0
    %1102 = vmatpush1.msra.mxu0 %v984
    %1103 = vmatprep.subr.mxu0 0.0
    %1104 = vmatpush1.msra.mxu0 %v985
    %1105 = vmatprep.subr.mxu0 0.0
    %1106 = vmatpush1.msra.mxu0 0.0
    %1107 = vmatprep.subr.mxu0 0.0
    %1108 = vmatpush1.msra.mxu0 0.0
    %1109 = vmatprep.subr.mxu0 0.0
    %1110 = vmatpush1.msra.mxu0 0.0
    %1111 = vmatprep.subr.mxu0 0.0
    %1112 = vmatpush1.msra.mxu0 0.0
    %1113 = vmatprep.subr.mxu0 0.0
    %1114 = vmatpush1.msra.mxu0 0.0
    %1115 = vmatprep.subr.mxu0 0.0
    %1116 = vmatpush1.msra.mxu0 0.0
    %1117 = vmatprep.subr.mxu0 0.0
    %1118 = vmatpush1.msra.mxu0 0.0
    %1119 = vmatprep.subr.mxu0 0.0
    %1120 = vmatpush1.msra.mxu0 0.0
    %1121 = vmatprep.subr.mxu0 0.0
    %1122 = vmatpush1.msra.mxu0 0.0
    %1123 = vmatprep.subr.mxu0 0.0
    %1124 = vmatpush1.msra.mxu0 0.0
    %1125 = vmatprep.subr.mxu0 0.0
    %1126 = vmatpush1.msra.mxu0 0.0
    %1127 = vmatprep.subr.mxu0 0.0
    %1128 = vmatpush1.msra.mxu0 0.0
    %1129 = vmatprep.subr.mxu0 0.0
    %1130 = vmatpush1.msra.mxu0 0.0
    %1131 = vmatprep.subr.mxu0 0.0
    %1132 = vmatpush1.msra.mxu0 0.0
    %1133 = vmatprep.subr.mxu0 0.0
    %1134 = vmatpush1.msra.mxu0 0.0
    %1135 = vmatprep.subr.mxu0 0.0
    %1136 = vmatpush1.msra.mxu0 0.0
    %1137 = vmatprep.mubr.f32.mxu0 0.0
    %1138 = vmatmul.mubr.f32.gmra.mrb[0].mxu0 %v1065
    %v1139 = vpop.f32.mrb[0].mxu0
    %v1140 = vadd.f32 0.0, %v1139
    %v1141 = vpop.f32.mrb[0].mxu0
    %1142 = vdwg.mxu0
    %v1143 = vmul.f32 %v1140, 0.03125
    %1144 = vmatprep.subr.mxu0 0.0
    %1145 = vmatpush1.msra.mxu0 %v970
    %1146 = vmatprep.subr.mxu0 0.0
    %1147 = vmatpush1.msra.mxu0 %v971
    %1148 = vmatprep.subr.mxu0 0.0
    %1149 = vmatpush1.msra.mxu0 %v972
    %1150 = vmatprep.subr.mxu0 0.0
    %1151 = vmatpush1.msra.mxu0 %v973
    %1152 = vmatprep.subr.mxu0 0.0
    %1153 = vmatpush1.msra.mxu0 %v974
    %1154 = vmatprep.subr.mxu0 0.0
    %1155 = vmatpush1.msra.mxu0 %v975
    %1156 = vmatprep.subr.mxu0 0.0
    %1157 = vmatpush1.msra.mxu0 %v976
    %1158 = vmatprep.subr.mxu0 0.0
    %1159 = vmatpush1.msra.mxu0 %v977
    %1160 = vmatprep.subr.mxu0 0.0
    %1161 = vmatpush1.msra.mxu0 %v978
    %1162 = vmatprep.subr.mxu0 0.0
    %1163 = vmatpush1.msra.mxu0 %v979
    %1164 = vmatprep.subr.mxu0 0.0
    %1165 = vmatpush1.msra.mxu0 %v980
    %1166 = vmatprep.subr.mxu0 0.0
    %1167 = vmatpush1.msra.mxu0 %v981
    %1168 = vmatprep.subr.mxu0 0.0
    %1169 = vmatpush1.msra.mxu0 %v982
    %1170 = vmatprep.subr.mxu0 0.0
    %1171 = vmatpush1.msra.mxu0 %v983
    %1172 = vmatprep.subr.mxu0 0.0
    %1173 = vmatpush1.msra.mxu0 %v984
    %1174 = vmatprep.subr.mxu0 0.0
    %1175 = vmatpush1.msra.mxu0 %v985
    %1176 = vmatprep.subr.mxu0 0.0
    %1177 = vmatpush1.msra.mxu0 0.0
    %1178 = vmatprep.subr.mxu0 0.0
    %1179 = vmatpush1.msra.mxu0 0.0
    %1180 = vmatprep.subr.mxu0 0.0
    %1181 = vmatpush1.msra.mxu0 0.0
    %1182 = vmatprep.subr.mxu0 0.0
    %1183 = vmatpush1.msra.mxu0 0.0
    %1184 = vmatprep.subr.mxu0 0.0
    %1185 = vmatpush1.msra.mxu0 0.0
    %1186 = vmatprep.subr.mxu0 0.0
    %1187 = vmatpush1.msra.mxu0 0.0
    %1188 = vmatprep.subr.mxu0 0.0
    %1189 = vmatpush1.msra.mxu0 0.0
    %1190 = vmatprep.subr.mxu0 0.0
    %1191 = vmatpush1.msra.mxu0 0.0
    %1192 = vmatprep.subr.mxu0 0.0
    %1193 = vmatpush1.msra.mxu0 0.0
    %1194 = vmatprep.subr.mxu0 0.0
    %1195 = vmatpush1.msra.mxu0 0.0
    %1196 = vmatprep.subr.mxu0 0.0
    %1197 = vmatpush1.msra.mxu0 0.0
    %1198 = vmatprep.subr.mxu0 0.0
    %1199 = vmatpush1.msra.mxu0 0.0
    %1200 = vmatprep.subr.mxu0 0.0
    %1201 = vmatpush1.msra.mxu0 0.0
    %1202 = vmatprep.subr.mxu0 0.0
    %1203 = vmatpush1.msra.mxu0 0.0
    %1204 = vmatprep.subr.mxu0 0.0
    %1205 = vmatpush1.msra.mxu0 0.0
    %1206 = vmatprep.subr.mxu0 0.0
    %1207 = vmatpush1.msra.mxu0 0.0
    %1208 = vmatprep.mubr.f32.mxu0 0.0
    %1209 = vmatmul.mubr.f32.gmra.mrb[0].mxu0 %v1072
    %v1210 = vpop.f32.mrb[0].mxu0
    %v1211 = vadd.f32 0.0, %v1210
    %v1212 = vpop.f32.mrb[0].mxu0
    %1213 = vdwg.mxu0
    %v1214 = vmul.f32 %v1211, 0.03125
    %v1215 = vmul.f32 %v1143, %v1143
    %v1216 = vsub.f32 %v1214, %v1215
    %v1217 = vadd.f32 %v1216, 1e-05
    %v1218 = vrsqrt.pop %v1217
    %v1219 = vmul.f32 %v988, %v1218
    %v1220 = vmul.f32 %v1143, %v1219
    %v1221 = vsub.f32 %v989, %v1220
    %vm1222 = vcmask 130048
    %v1224 = vsel %vm1222, %v1219, 0
    %1226 = vmatprep.subr.mxu0 0.0
    %1227 = vmatpush1.msra.mxu0 %v986
    %1228 = vmatprep.subr.mxu0 0.0
    %1229 = vmatpush1.msra.mxu0 %v987
    %1230 = vmatprep.subr.mxu0 0.0
    %1231 = vmatpush1.msra.mxu0 0.0
    %1232 = vmatprep.subr.mxu0 0.0
    %1233 = vmatpush1.msra.mxu0 0.0
    %1234 = vmatprep.subr.mxu0 0.0
    %1235 = vmatpush1.msra.mxu0 0.0
    %1236 = vmatprep.subr.mxu0 0.0
    %1237 = vmatpush1.msra.mxu0 0.0
    %1238 = vmatprep.subr.mxu0 0.0
    %1239 = vmatpush1.msra.mxu0 0.0
    %1240 = vmatprep.subr.mxu0 0.0
    %1241 = vmatpush1.msra.mxu0 0.0
    %1242 = vmatprep.subr.mxu0 0.0
    %1243 = vmatpush1.msra.mxu0 0.0
    %1244 = vmatprep.subr.mxu0 0.0
    %1245 = vmatpush1.msra.mxu0 0.0
    %1246 = vmatprep.subr.mxu0 0.0
    %1247 = vmatpush1.msra.mxu0 0.0
    %1248 = vmatprep.subr.mxu0 0.0
    %1249 = vmatpush1.msra.mxu0 0.0
    %1250 = vmatprep.subr.mxu0 0.0
    %1251 = vmatpush1.msra.mxu0 0.0
    %1252 = vmatprep.subr.mxu0 0.0
    %1253 = vmatpush1.msra.mxu0 0.0
    %1254 = vmatprep.subr.mxu0 0.0
    %1255 = vmatpush1.msra.mxu0 0.0
    %1256 = vmatprep.subr.mxu0 0.0
    %1257 = vmatpush1.msra.mxu0 0.0
    %1258 = vmatprep.subr.mxu0 0.0
    %1259 = vmatpush1.msra.mxu0 0.0
    %1260 = vmatprep.subr.mxu0 0.0
    %1261 = vmatpush1.msra.mxu0 0.0
    %1262 = vmatprep.subr.mxu0 0.0
    %1263 = vmatpush1.msra.mxu0 0.0
    %1264 = vmatprep.subr.mxu0 0.0
    %1265 = vmatpush1.msra.mxu0 0.0
    %1266 = vmatprep.subr.mxu0 0.0
    %1267 = vmatpush1.msra.mxu0 0.0
    %1268 = vmatprep.subr.mxu0 0.0
    %1269 = vmatpush1.msra.mxu0 0.0
    %1270 = vmatprep.subr.mxu0 0.0
    %1271 = vmatpush1.msra.mxu0 0.0
    %1272 = vmatprep.subr.mxu0 0.0
    %1273 = vmatpush1.msra.mxu0 0.0
    %1274 = vmatprep.subr.mxu0 0.0
    %1275 = vmatpush1.msra.mxu0 0.0
    %1276 = vmatprep.subr.mxu0 0.0
    %1277 = vmatpush1.msra.mxu0 0.0
    %1278 = vmatprep.subr.mxu0 0.0
    %1279 = vmatpush1.msra.mxu0 0.0
    %1280 = vmatprep.subr.mxu0 0.0
    %1281 = vmatpush1.msra.mxu0 0.0
    %1282 = vmatprep.subr.mxu0 0.0
    %1283 = vmatpush1.msra.mxu0 0.0
    %1284 = vmatprep.subr.mxu0 0.0
    %1285 = vmatpush1.msra.mxu0 0.0
    %1286 = vmatprep.subr.mxu0 0.0
    %1287 = vmatpush1.msra.mxu0 0.0
    %1288 = vmatprep.subr.mxu0 0.0
    %1289 = vmatpush1.msra.mxu0 0.0
    %1290 = vmatprep.mubr.f32.mxu0 0.0
    %1291 = vmatmul.mubr.f32.gmra.mrb[0].mxu0 %v1224
    %v1292 = vpop.f32.mrb[0].mxu0
    %v1293 = vadd.f32 0.0, %v1292
    %v1294 = vpop.f32.mrb[0].mxu0
    %1295 = vdwg.mxu0
    %v1297 = vsel %vm1222, %v1221, 0
    %1299 = vmatprep.subr.mxu0 0.0
    %1300 = vmatpush1.msra.mxu0 %v986
    %1301 = vmatprep.subr.mxu0 0.0
    %1302 = vmatpush1.msra.mxu0 %v987
    %1303 = vmatprep.subr.mxu0 0.0
    %1304 = vmatpush1.msra.mxu0 0.0
    %1305 = vmatprep.subr.mxu0 0.0
    %1306 = vmatpush1.msra.mxu0 0.0
    %1307 = vmatprep.subr.mxu0 0.0
    %1308 = vmatpush1.msra.mxu0 0.0
    %1309 = vmatprep.subr.mxu0 0.0
    %1310 = vmatpush1.msra.mxu0 0.0
    %1311 = vmatprep.subr.mxu0 0.0
    %1312 = vmatpush1.msra.mxu0 0.0
    %1313 = vmatprep.subr.mxu0 0.0
    %1314 = vmatpush1.msra.mxu0 0.0
    %1315 = vmatprep.subr.mxu0 0.0
    %1316 = vmatpush1.msra.mxu0 0.0
    %1317 = vmatprep.subr.mxu0 0.0
    %1318 = vmatpush1.msra.mxu0 0.0
    %1319 = vmatprep.subr.mxu0 0.0
    %1320 = vmatpush1.msra.mxu0 0.0
    %1321 = vmatprep.subr.mxu0 0.0
    %1322 = vmatpush1.msra.mxu0 0.0
    %1323 = vmatprep.subr.mxu0 0.0
    %1324 = vmatpush1.msra.mxu0 0.0
    %1325 = vmatprep.subr.mxu0 0.0
    %1326 = vmatpush1.msra.mxu0 0.0
    %1327 = vmatprep.subr.mxu0 0.0
    %1328 = vmatpush1.msra.mxu0 0.0
    %1329 = vmatprep.subr.mxu0 0.0
    %1330 = vmatpush1.msra.mxu0 0.0
    %1331 = vmatprep.subr.mxu0 0.0
    %1332 = vmatpush1.msra.mxu0 0.0
    %1333 = vmatprep.subr.mxu0 0.0
    %1334 = vmatpush1.msra.mxu0 0.0
    %1335 = vmatprep.subr.mxu0 0.0
    %1336 = vmatpush1.msra.mxu0 0.0
    %1337 = vmatprep.subr.mxu0 0.0
    %1338 = vmatpush1.msra.mxu0 0.0
    %1339 = vmatprep.subr.mxu0 0.0
    %1340 = vmatpush1.msra.mxu0 0.0
    %1341 = vmatprep.subr.mxu0 0.0
    %1342 = vmatpush1.msra.mxu0 0.0
    %1343 = vmatprep.subr.mxu0 0.0
    %1344 = vmatpush1.msra.mxu0 0.0
    %1345 = vmatprep.subr.mxu0 0.0
    %1346 = vmatpush1.msra.mxu0 0.0
    %1347 = vmatprep.subr.mxu0 0.0
    %1348 = vmatpush1.msra.mxu0 0.0
    %1349 = vmatprep.subr.mxu0 0.0
    %1350 = vmatpush1.msra.mxu0 0.0
    %1351 = vmatprep.subr.mxu0 0.0
    %1352 = vmatpush1.msra.mxu0 0.0
    %1353 = vmatprep.subr.mxu0 0.0
    %1354 = vmatpush1.msra.mxu0 0.0
    %1355 = vmatprep.subr.mxu0 0.0
    %1356 = vmatpush1.msra.mxu0 0.0
    %1357 = vmatprep.subr.mxu0 0.0
    %1358 = vmatpush1.msra.mxu0 0.0
    %1359 = vmatprep.subr.mxu0 0.0
    %1360 = vmatpush1.msra.mxu0 0.0
    %1361 = vmatprep.subr.mxu0 0.0
    %1362 = vmatpush1.msra.mxu0 0.0
    %1363 = vmatprep.mubr.f32.mxu0 0.0
    %1364 = vmatmul.mubr.f32.gmra.mrb[0].mxu0 %v1297
    %v1365 = vpop.f32.mrb[0].mxu0
    %v1366 = vadd.f32 0.0, %v1365
    %v1367 = vpop.f32.mrb[0].mxu0
    %1368 = vdwg.mxu0
    %v1369 = vlaneseq
    %v1370 = vshrl.u32 %v1369, 7
    %v1371 = vsub.s32 0, %v1370
    %v1372 = vrot.slane %v1293, %v1371
    %v1373 = vmul.f32 %v1057, %v1372
    %v1374 = vlaneseq
    %v1375 = vshrl.u32 %v1374, 7
    %v1376 = vsub.s32 0, %v1375
    %v1377 = vrot.slane %v1366, %v1376
    %v1378 = vadd.f32 %v1373, %v1377
    %v1379 = vmul.f32 %v1378, 0.01
    %v1380 = vmax.f32 %v1378, %v1379
    %v1381 = vld [vmem:[#allocation4 + $0x820] sm:$0xff]
    %v1382 = vld [vmem:[#allocation4 + $0x830] sm:$0xff]
    %v1383 = vld [vmem:[#allocation4 + $0x840] sm:$0xff]
    %v1384 = vld [vmem:[#allocation4 + $0x850] sm:$0xff]
    %v1385 = vld [vmem:[#allocation4 + $0x860] sm:$0xff]
    %v1386 = vld [vmem:[#allocation4 + $0x870] sm:$0xff]
    %v1387 = vld [vmem:[#allocation4 + $0x880] sm:$0xff]
    %v1388 = vld [vmem:[#allocation4 + $0x890] sm:$0xff]
    %v1389 = vld [vmem:[#allocation4 + $0x8a0] sm:$0xff]
    %v1390 = vld [vmem:[#allocation4 + $0x8b0] sm:$0xff]
    %v1391 = vld [vmem:[#allocation4 + $0x8c0] sm:$0xff]
    %v1392 = vld [vmem:[#allocation4 + $0x8d0] sm:$0xff]
    %v1393 = vld [vmem:[#allocation4 + $0x8e0] sm:$0xff]
    %v1394 = vld [vmem:[#allocation4 + $0x8f0] sm:$0xff]
    %v1395 = vld [vmem:[#allocation4 + $0x900] sm:$0xff]
    %v1396 = vld [vmem:[#allocation4 + $0x910] sm:$0xff]
    %1397 = vmatprep.subr.mxu0 0.0
    %1398 = vmatpush1.msra.mxu0 %v1381
    %1399 = vmatprep.subr.mxu0 0.0
    %1400 = vmatpush1.msra.mxu0 %v1382
    %1401 = vmatprep.subr.mxu0 0.0
    %1402 = vmatpush1.msra.mxu0 %v1383
    %1403 = vmatprep.subr.mxu0 0.0
    %1404 = vmatpush1.msra.mxu0 %v1384
    %1405 = vmatprep.subr.mxu0 0.0
    %1406 = vmatpush1.msra.mxu0 %v1385
    %1407 = vmatprep.subr.mxu0 0.0
    %1408 = vmatpush1.msra.mxu0 %v1386
    %1409 = vmatprep.subr.mxu0 0.0
    %1410 = vmatpush1.msra.mxu0 %v1387
    %1411 = vmatprep.subr.mxu0 0.0
    %1412 = vmatpush1.msra.mxu0 %v1388
    %1413 = vmatprep.subr.mxu0 0.0
    %1414 = vmatpush1.msra.mxu0 %v1389
    %1415 = vmatprep.subr.mxu0 0.0
    %1416 = vmatpush1.msra.mxu0 %v1390
    %1417 = vmatprep.subr.mxu0 0.0
    %1418 = vmatpush1.msra.mxu0 %v1391
    %1419 = vmatprep.subr.mxu0 0.0
    %1420 = vmatpush1.msra.mxu0 %v1392
    %1421 = vmatprep.subr.mxu0 0.0
    %1422 = vmatpush1.msra.mxu0 %v1393
    %1423 = vmatprep.subr.mxu0 0.0
    %1424 = vmatpush1.msra.mxu0 %v1394
    %1425 = vmatprep.subr.mxu0 0.0
    %1426 = vmatpush1.msra.mxu0 %v1395
    %1427 = vmatprep.subr.mxu0 0.0
    %1428 = vmatpush1.msra.mxu0 %v1396
    %1429 = vmatprep.subr.mxu0 0.0
    %1430 = vmatpush1.msra.mxu0 0.0
    %1431 = vmatprep.subr.mxu0 0.0
    %1432 = vmatpush1.msra.mxu0 0.0
    %1433 = vmatprep.subr.mxu0 0.0
    %1434 = vmatpush1.msra.mxu0 0.0
    %1435 = vmatprep.subr.mxu0 0.0
    %1436 = vmatpush1.msra.mxu0 0.0
    %1437 = vmatprep.subr.mxu0 0.0
    %1438 = vmatpush1.msra.mxu0 0.0
    %1439 = vmatprep.subr.mxu0 0.0
    %1440 = vmatpush1.msra.mxu0 0.0
    %1441 = vmatprep.subr.mxu0 0.0
    %1442 = vmatpush1.msra.mxu0 0.0
    %1443 = vmatprep.subr.mxu0 0.0
    %1444 = vmatpush1.msra.mxu0 0.0
    %1445 = vmatprep.subr.mxu0 0.0
    %1446 = vmatpush1.msra.mxu0 0.0
    %1447 = vmatprep.subr.mxu0 0.0
    %1448 = vmatpush1.msra.mxu0 0.0
    %1449 = vmatprep.subr.mxu0 0.0
    %1450 = vmatpush1.msra.mxu0 0.0
    %1451 = vmatprep.subr.mxu0 0.0
    %1452 = vmatpush1.msra.mxu0 0.0
    %1453 = vmatprep.subr.mxu0 0.0
    %1454 = vmatpush1.msra.mxu0 0.0
    %1455 = vmatprep.subr.mxu0 0.0
    %1456 = vmatpush1.msra.mxu0 0.0
    %1457 = vmatprep.subr.mxu0 0.0
    %1458 = vmatpush1.msra.mxu0 0.0
    %1459 = vmatprep.subr.mxu0 0.0
    %1460 = vmatpush1.msra.mxu0 0.0
    %1461 = vmatprep.mubr.f32.mxu0 0.0
    %1462 = vmatmul.mubr.f32.gmra.mrb[0].mxu0 %v1380
    %v1463 = vpop.f32.mrb[0].mxu0
    %v1464 = vadd.f32 0.0, %v1463
    %v1465 = vpop.f32.mrb[0].mxu0
    %1466 = vdwg.mxu0
    %v1467 = vsub.f32 0.0, %v1464
    %v1468 = vmul.f32 %v1467, 1.442695
    %v1469 = vpow.pop %v1468
    %v1470 = vadd.f32 %v1469, 1.0
    %v1471 = vrcp.pop %v1470
    %v1472 = vmul.f32 1.0, %v1471
    %vm1473 = vcmask 7168
    %1474 = vst.msk [vmem:[%s2] sm:$0xff] %vm1473, %v1472
    // Predicated region
    $region18: #{tpu_custom_call.1} parent=1 // pred_check
      _
    $region19: #{tpu_custom_call.1} parent=1 // pred_check_branch
      %1476 = sbr.rel (0) target = $region21
    $region20: #{tpu_custom_call.1} parent=1 // pred_region
      _
    $region21: #{tpu_custom_call.1} parent=1 // pred_fallthru
      _
    // Predicated region
    $region22: #{tpu_custom_call.1} parent=1 // pred_check
      _
    $region23: #{tpu_custom_call.1} parent=1 // pred_check_branch
      %1478 = sbr.rel (0) target = $region25
    $region24: #{tpu_custom_call.1} parent=1 // pred_region
      _
    $region25: #{tpu_custom_call.1} parent=1 // pred_fallthru
      _
    %1479 = vsyncpa [#allocation3], 1
    %1480 = vsyncpa [#allocation5], 1

</llo_original>
